<compile_context>
chip_gen: v7x
topology: tpu7x:2x2x1
jax: 0.10.0
libtpu: 0.0.40
codegen_flags: <defaults>
</compile_context>

<pallas_src>
import jax
import jax.numpy as jnp
import numpy as np
from jax.experimental import pallas as pl
from jax.experimental.pallas import tpu as pltpu


def _vmem_limit_bytes():
    # Generation-aware scoped-VMEM limit: ~7/8 of physical (leave compiler
    # scratch headroom), capped at 112 MiB (v5e/v6e); ~56 MiB on v7x.
    cap = 64 * 1024 * 1024
    try:
        info = pltpu.get_tpu_info()
        cap = int(getattr(info, "vmem_capacity_bytes", cap))
    except Exception:
        pass
    return min(int(cap * 7 // 8), 112 * 1024 * 1024)


# ----------------------------------------------------------------------------
# Fused BasicBlock kernel (one batch element per grid step)
# ----------------------------------------------------------------------------
def _make_kernel(K, pad, H, apply_se, has_proj):
    def kernel(x_ref,                    # (1, H, W*Cin)       f32
               t1_ref,                   # (K, W*Cin, W*Cmid)  bf16 block-Toeplitz
               s1_ref, b1_ref,           # (1, W*Cmid)         folded BN1 (lane-tiled)
               t2_ref,                   # (K, W*Cmid, W*Cout) bf16 block-Toeplitz
               s2_ref, b2_ref,           # (1, W*Cout)         folded BN2 (lane-tiled)
               m1_ref, sb1_ref,          # (W*Cout, Chid),(1,Chid)  GAP+fc1 fused
               w2t_ref, sb2_ref,         # (Chid, W*Cout),(1,W*Cout) fc2 lane-tiled
               *rest):
        if has_proj:
            pw_ref, pb_ref, o_ref, xp1_ref, xp2_ref = rest
        else:
            o_ref, xp1_ref, xp2_ref = rest

        WCi = x_ref.shape[-1]
        WCm = t1_ref.shape[-1]
        Hp = H + 2 * pad

        # Zero only the 2*pad halo rows (tiny; every step, so it is correct even
        # when the batch grid axis is split across cores).  Horizontal padding
        # is folded into the Toeplitz weights -> no horizontal halo at all.
        xp1_ref[0:pad, :] = jnp.zeros((pad, WCi), jnp.float32)
        xp1_ref[pad + H:Hp, :] = jnp.zeros((pad, WCi), jnp.float32)
        xp2_ref[0:pad, :] = jnp.zeros((pad, WCm), jnp.float32)
        xp2_ref[pad + H:Hp, :] = jnp.zeros((pad, WCm), jnp.float32)

        x2d = x_ref[0]                                     # (H, W*Cin) f32
        xp1_ref[pad:pad + H, :] = x2d

        def conv(xp_ref, t_ref, s, b):
            # Shift-and-matmul over the K kernel rows.  Contraction depth is
            # W*C_in (channels packed dense -> no zero-FLOP channel padding);
            # operands are bf16 for the MXU, accumulation is f32.
            xv = xp_ref[...].astype(jnp.bfloat16)          # cast once per conv
            acc = jnp.dot(xv[0:H], t_ref[0],
                          preferred_element_type=jnp.float32)
            for kh in range(1, K):
                acc = acc + jnp.dot(xv[kh:kh + H], t_ref[kh],
                                    preferred_element_type=jnp.float32)
            return jnp.maximum(acc * s + b, 0.0)           # folded BN + ReLU

        y = conv(xp1_ref, t1_ref, s1_ref[...], b1_ref[...])    # (H, W*Cmid)
        xp2_ref[pad:pad + H, :] = y                             # feed conv2
        y = conv(xp2_ref, t2_ref, s2_ref[...], b2_ref[...])    # (H, W*Cout)

        if apply_se:
            # GAP and fc1 are fused into m1 (includes the 1/(H*W) factor); fc2,
            # biases and the gate are lane-tiled over W -> no in-kernel
            # reshape/tile of the per-channel gate is needed.
            ysum = jnp.sum(y, axis=0, keepdims=True)            # (1, W*Cout)
            h = jnp.dot(ysum, m1_ref[...],
                        preferred_element_type=jnp.float32)
            h = jnp.maximum(h + sb1_ref[...], 0.0)              # (1, Chid)
            z = jnp.dot(h, w2t_ref[...],
                        preferred_element_type=jnp.float32) + sb2_ref[...]
            gate = 1.0 / (1.0 + jnp.exp(-z))                    # (1, W*Cout)
            y = y * gate

        if has_proj:
            resid = jnp.dot(x2d.astype(jnp.bfloat16), pw_ref[...],
                            preferred_element_type=jnp.float32) + pb_ref[...]
        else:
            resid = x2d        # identity path: no eye-matmul, exact f32 residual

        o_ref[0] = (y + resid).astype(o_ref.dtype)

    return kernel


# ----------------------------------------------------------------------------
# Wrapper: layout conversion + Toeplitz/lane-tiled parameter prep + pallas_call
# ----------------------------------------------------------------------------
def basic_block_forward(x_nchw, p, apply_SE=True):
    B, Cin, H, W = x_nchw.shape
    w1, w2 = p["w1"], p["w2"]                    # HWIO
    K = w1.shape[0]
    pad = (K - 1) // 2
    Cmid, Cout = w1.shape[3], w2.shape[3]
    has_proj = p["proj_w"] is not None
    if not has_proj:
        assert Cin == Cout, "identity residual requires Cin == Cout"

    WCi, WCm, WCo = W * Cin, W * Cmid, W * Cout
    HW = H * W

    # NCHW -> channels-minor rows (B, H, W*C): exact-sized HBM traffic.
    x = jnp.transpose(x_nchw, (0, 2, 3, 1)).astype(jnp.float32).reshape(B, H, WCi)

    # Conv weights -> per-kernel-row block-Toeplitz matrices (bf16):
    #   T_kh[(w + kw - pad)*ci + c, w*co + o] = w[kh, kw, c, o]
    # out-of-range w+kw-pad blocks are simply absent (horizontal zero padding).
    def toeplitz(w_hwio, ci, co):
        mats = []
        for kh in range(K):
            m = jnp.zeros((W * ci, W * co), jnp.float32)
            for kw in range(K):
                shift = np.eye(W, k=-(kw - pad), dtype=np.float32)
                m = m + jnp.kron(shift, w_hwio[kh, kw].astype(jnp.float32))
            mats.append(m)
        return jnp.stack(mats).astype(jnp.bfloat16)          # (K, W*ci, W*co)

    t1 = toeplitz(w1, Cin, Cmid)
    t2 = toeplitz(w2, Cmid, Cout)

    tile = lambda v: jnp.tile(v.astype(jnp.float32), W).reshape(1, -1)
    s1, b1 = tile(p["bn1_scale"]), tile(p["bn1_shift"])       # (1, W*Cmid)
    s2, b2 = tile(p["bn2_scale"]), tile(p["bn2_shift"])       # (1, W*Cout)

    # SE: GAP + fc1 fused into m1; fc2 / biases lane-tiled over W.
    Chid = p["se_w1t"].shape[1]
    m1 = jnp.tile(p["se_w1t"].astype(jnp.float32), (W, 1)) / float(HW)  # (W*Cout, Chid)
    sb1 = p["se_b1"].astype(jnp.float32).reshape(1, Chid)
    w2t = jnp.tile(p["se_w2t"].astype(jnp.float32), (1, W))             # (Chid, W*Cout)
    sb2 = tile(p["se_b2"])                                              # (1, W*Cout)

    kernel = _make_kernel(K, pad, H, apply_SE, has_proj)
    c2 = lambda b: (0, 0)
    c3 = lambda b: (0, 0, 0)

    operands = [x, t1, s1, b1, t2, s2, b2, m1, sb1, w2t, sb2]
    in_specs = [
        pl.BlockSpec((1, H, WCi), lambda b: (b, 0, 0)),
        pl.BlockSpec((K, WCi, WCm), c3),
        pl.BlockSpec((1, WCm), c2), pl.BlockSpec((1, WCm), c2),
        pl.BlockSpec((K, WCm, WCo), c3),
        pl.BlockSpec((1, WCo), c2), pl.BlockSpec((1, WCo), c2),
        pl.BlockSpec((WCo, Chid), c2), pl.BlockSpec((1, Chid), c2),
        pl.BlockSpec((Chid, WCo), c2), pl.BlockSpec((1, WCo), c2),
    ]
    if has_proj:
        pw = jnp.kron(np.eye(W, dtype=np.float32),
                      p["proj_w"][0, 0].astype(jnp.float32)).astype(jnp.bfloat16)
        pb = tile(p["proj_b"])
        operands += [pw, pb]
        in_specs += [pl.BlockSpec((WCi, WCo), c2), pl.BlockSpec((1, WCo), c2)]

    out = pl.pallas_call(
        kernel,
        out_shape=jax.ShapeDtypeStruct((B, H, WCo), jnp.float32),
        grid=(B,),
        in_specs=in_specs,
        out_specs=pl.BlockSpec((1, H, WCo), lambda b: (b, 0, 0)),
        scratch_shapes=[
            pltpu.VMEM((H + 2 * pad, WCi), jnp.float32),   # conv1 row-padded input
            pltpu.VMEM((H + 2 * pad, WCm), jnp.float32),   # conv2 row-padded input
        ],
        compiler_params=pltpu.CompilerParams(
            dimension_semantics=("parallel",),
            vmem_limit_bytes=_vmem_limit_bytes(),
        ),
    )(*operands)

    return jnp.transpose(out.reshape(B, H, W, Cout), (0, 3, 1, 2))   # -> NCHW


# ----------------------------------------------------------------------------
# Pure-JAX reference (same math; conv operands bf16 to mirror kernel numerics)
# ----------------------------------------------------------------------------
def ref_forward(x_nchw, p):
    x = jnp.transpose(x_nchw, (0, 2, 3, 1)).astype(jnp.float32)
    pad = (p["w1"].shape[0] - 1) // 2

    def conv(a, w, pd):
        return jax.lax.conv_general_dilated(
            a.astype(jnp.bfloat16), w.astype(jnp.bfloat16), (1, 1),
            [(pd, pd), (pd, pd)],
            dimension_numbers=("NHWC", "HWIO", "NHWC"),
            preferred_element_type=jnp.float32)

    y = jnp.maximum(conv(x, p["w1"], pad) * p["bn1_scale"] + p["bn1_shift"], 0.0)
    y = jnp.maximum(conv(y, p["w2"], pad) * p["bn2_scale"] + p["bn2_shift"], 0.0)
    gap = y.mean((1, 2))
    h = jnp.maximum(gap @ p["se_w1t"] + p["se_b1"], 0.0)
    gate = 1.0 / (1.0 + jnp.exp(-(h @ p["se_w2t"] + p["se_b2"])))
    out = gate[:, None, None, :] * y
    if p["proj_w"] is not None:
        resid = conv(x, p["proj_w"], 0) + p["proj_b"]
    else:
        resid = x
    return jnp.transpose(resid + out, (0, 3, 1, 2))


# ----------------------------------------------------------------------------
# Deterministic parameter init (PyTorch shapes, converted to kernel layouts)
# ----------------------------------------------------------------------------
def init_params(key, cin, cmid, cout, reduction=4, eps=1e-5):
    ks = jax.random.split(key, 20)
    chid = cout // reduction

    def fold_bn(kg, kb, km, kv, c):
        gamma = 1.0 + 0.1 * jax.random.normal(kg, (c,), jnp.float32)
        beta = 0.1 * jax.random.normal(kb, (c,), jnp.float32)
        mean = 0.1 * jax.random.normal(km, (c,), jnp.float32)
        var = 0.5 + jax.random.uniform(kv, (c,), jnp.float32)
        scale = gamma / jnp.sqrt(var + eps)
        return scale, beta - mean * scale

    w1_oihw = 0.1 * jax.random.normal(ks[0], (cmid, cin, 3, 3), jnp.float32)
    w2_oihw = 0.1 * jax.random.normal(ks[1], (cout, cmid, 3, 3), jnp.float32)
    bn1_scale, bn1_shift = fold_bn(ks[2], ks[3], ks[4], ks[5], cmid)
    bn2_scale, bn2_shift = fold_bn(ks[6], ks[7], ks[8], ks[9], cout)

    se_w1 = 0.2 * jax.random.normal(ks[10], (chid, cout), jnp.float32)  # Linear(cout, chid)
    se_b1 = 0.1 * jax.random.normal(ks[11], (chid,), jnp.float32)
    se_w2 = 0.2 * jax.random.normal(ks[12], (cout, chid), jnp.float32)  # Linear(chid, cout)
    se_b2 = 0.1 * jax.random.normal(ks[13], (cout,), jnp.float32)

    if cin != cout:
        proj_oihw = 0.2 * jax.random.normal(ks[14], (cout, cin, 1, 1), jnp.float32)
        proj_w = jnp.transpose(proj_oihw, (2, 3, 1, 0))                 # HWIO
        proj_b = 0.1 * jax.random.normal(ks[15], (cout,), jnp.float32)
    else:
        proj_w, proj_b = None, None

    return dict(
        w1=jnp.transpose(w1_oihw, (2, 3, 1, 0)),   # OIHW -> HWIO
        w2=jnp.transpose(w2_oihw, (2, 3, 1, 0)),
        bn1_scale=bn1_scale, bn1_shift=bn1_shift,
        bn2_scale=bn2_scale, bn2_shift=bn2_shift,
        se_w1t=se_w1.T, se_b1=se_b1,               # x @ W.T  ->  x @ w1t
        se_w2t=se_w2.T, se_b2=se_b2,
        proj_w=proj_w, proj_b=proj_b,
    )


if __name__ == "__main__":
    key = jax.random.PRNGKey(0)
    fwd = jax.jit(basic_block_forward, static_argnames=("apply_SE",))

    # (Cin, Cmid, Cout): projection-residual case and identity-residual case.
    for (Cin, Cmid, Cout) in [(8, 8, 16), (8, 8, 8)]:
        B, H, W = 2, 16, 16
        kx, kp, key = jax.random.split(key, 3)
        x = jax.random.normal(kx, (B, Cin, H, W), jnp.float32)
        params = init_params(kp, Cin, Cmid, Cout)

        out = jax.block_until_ready(fwd(x, params))
        ref = jax.block_until_ready(ref_forward(x, params))

        assert out.shape == (B, Cout, H, W), out.shape
        np.testing.assert_allclose(np.asarray(out), np.asarray(ref),
                                   rtol=5e-3, atol=5e-3)

    print("KERNEL_OK")
</pallas_src>

<mosaic_0001>
module attributes {stable_mosaic.version = 11 : i64} {
  func.func @kernel(%arg0: i32, %arg1: memref<1x16x128xf32, #tpu.memory_space<vmem>>, %arg2: memref<3x128x128xbf16, #tpu.memory_space<vmem>>, %arg3: memref<1x128xf32, #tpu.memory_space<vmem>>, %arg4: memref<1x128xf32, #tpu.memory_space<vmem>>, %arg5: memref<3x128x256xbf16, #tpu.memory_space<vmem>>, %arg6: memref<1x256xf32, #tpu.memory_space<vmem>>, %arg7: memref<1x256xf32, #tpu.memory_space<vmem>>, %arg8: memref<256x4xf32, #tpu.memory_space<vmem>>, %arg9: memref<1x4xf32, #tpu.memory_space<vmem>>, %arg10: memref<4x256xf32, #tpu.memory_space<vmem>>, %arg11: memref<1x256xf32, #tpu.memory_space<vmem>>, %arg12: memref<128x256xbf16, #tpu.memory_space<vmem>>, %arg13: memref<1x256xf32, #tpu.memory_space<vmem>>, %arg14: memref<1x16x256xf32, #tpu.memory_space<vmem>>, %arg15: memref<18x128xf32, #tpu.memory_space<vmem>>, %arg16: memref<18x128xf32, #tpu.memory_space<vmem>>) attributes {dimension_semantics = [#tpu.dimension_semantics<parallel>], iteration_bounds = array<i64: 2>, scalar_prefetch = 0 : i64, scratch_operands = 2 : i64, tpu.core_type = #tpu.core_type<tc>, window_params = [{transform_indices = @transform_0, window_bounds = array<i64: 1, 16, 128>}, {pipeline_mode = #tpu.pipeline_mode<synchronous>, transform_indices = @transform_1, window_bounds = array<i64: 3, 128, 128>}, {pipeline_mode = #tpu.pipeline_mode<synchronous>, transform_indices = @transform_2, window_bounds = array<i64: 1, 128>}, {pipeline_mode = #tpu.pipeline_mode<synchronous>, transform_indices = @transform_3, window_bounds = array<i64: 1, 128>}, {pipeline_mode = #tpu.pipeline_mode<synchronous>, transform_indices = @transform_4, window_bounds = array<i64: 3, 128, 256>}, {pipeline_mode = #tpu.pipeline_mode<synchronous>, transform_indices = @transform_5, window_bounds = array<i64: 1, 256>}, {pipeline_mode = #tpu.pipeline_mode<synchronous>, transform_indices = @transform_6, window_bounds = array<i64: 1, 256>}, {pipeline_mode = #tpu.pipeline_mode<synchronous>, transform_indices = @transform_7, window_bounds = array<i64: 256, 4>}, {pipeline_mode = #tpu.pipeline_mode<synchronous>, transform_indices = @transform_8, window_bounds = array<i64: 1, 4>}, {pipeline_mode = #tpu.pipeline_mode<synchronous>, transform_indices = @transform_9, window_bounds = array<i64: 4, 256>}, {pipeline_mode = #tpu.pipeline_mode<synchronous>, transform_indices = @transform_10, window_bounds = array<i64: 1, 256>}, {pipeline_mode = #tpu.pipeline_mode<synchronous>, transform_indices = @transform_11, window_bounds = array<i64: 128, 256>}, {pipeline_mode = #tpu.pipeline_mode<synchronous>, transform_indices = @transform_12, window_bounds = array<i64: 1, 256>}, {transform_indices = @transform_13, window_bounds = array<i64: 1, 16, 256>}]} {
    %cst = arith.constant 0.000000e+00 : f32
    %0 = vector.broadcast %cst : f32 to vector<1x128xf32>
    %c0 = arith.constant 0 : index
    %c0_0 = arith.constant 0 : index
    %1 = vector.load %arg15[%c0, %c0_0] : memref<18x128xf32, #tpu.memory_space<vmem>>, vector<1x128xf32>
    tpu.vector_store %arg15[%c0, %c0_0], %0 {strides = array<i32>} : memref<18x128xf32, #tpu.memory_space<vmem>>, vector<1x128xf32>,
    %cst_1 = arith.constant 0.000000e+00 : f32
    %2 = vector.broadcast %cst_1 : f32 to vector<1x128xf32>
    %c17 = arith.constant 17 : index
    %c0_2 = arith.constant 0 : index
    %3 = vector.load %arg15[%c17, %c0_2] : memref<18x128xf32, #tpu.memory_space<vmem>>, vector<1x128xf32>
    tpu.vector_store %arg15[%c17, %c0_2], %2 {strides = array<i32>} : memref<18x128xf32, #tpu.memory_space<vmem>>, vector<1x128xf32>,
    %cst_3 = arith.constant 0.000000e+00 : f32
    %4 = vector.broadcast %cst_3 : f32 to vector<1x128xf32>
    %c0_4 = arith.constant 0 : index
    %c0_5 = arith.constant 0 : index
    %5 = vector.load %arg16[%c0_4, %c0_5] : memref<18x128xf32, #tpu.memory_space<vmem>>, vector<1x128xf32>
    tpu.vector_store %arg16[%c0_4, %c0_5], %4 {strides = array<i32>} : memref<18x128xf32, #tpu.memory_space<vmem>>, vector<1x128xf32>,
    %cst_6 = arith.constant 0.000000e+00 : f32
    %6 = vector.broadcast %cst_6 : f32 to vector<1x128xf32>
    %c17_7 = arith.constant 17 : index
    %c0_8 = arith.constant 0 : index
    %7 = vector.load %arg16[%c17_7, %c0_8] : memref<18x128xf32, #tpu.memory_space<vmem>>, vector<1x128xf32>
    tpu.vector_store %arg16[%c17_7, %c0_8], %6 {strides = array<i32>} : memref<18x128xf32, #tpu.memory_space<vmem>>, vector<1x128xf32>,
    %c0_9 = arith.constant 0 : index
    %c0_10 = arith.constant 0 : index
    %c0_11 = arith.constant 0 : index
    %8 = vector.load %arg1[%c0_9, %c0_10, %c0_11] : memref<1x16x128xf32, #tpu.memory_space<vmem>>, vector<1x16x128xf32>
    %9 = vector.shape_cast %8 : vector<1x16x128xf32> to vector<16x128xf32>
    %c1 = arith.constant 1 : index
    %c0_12 = arith.constant 0 : index
    %10 = vector.load %arg15[%c1, %c0_12] : memref<18x128xf32, #tpu.memory_space<vmem>>, vector<16x128xf32>
    tpu.vector_store %arg15[%c1, %c0_12], %9 {strides = array<i32>} : memref<18x128xf32, #tpu.memory_space<vmem>>, vector<16x128xf32>,
    %c0_13 = arith.constant 0 : index
    %c0_14 = arith.constant 0 : index
    %11 = vector.load %arg3[%c0_13, %c0_14] : memref<1x128xf32, #tpu.memory_space<vmem>>, vector<1x128xf32>
    %c0_15 = arith.constant 0 : index
    %c0_16 = arith.constant 0 : index
    %12 = vector.load %arg4[%c0_15, %c0_16] : memref<1x128xf32, #tpu.memory_space<vmem>>, vector<1x128xf32>
    %c0_17 = arith.constant 0 : index
    %c0_18 = arith.constant 0 : index
    %13 = vector.load %arg15[%c0_17, %c0_18] : memref<18x128xf32, #tpu.memory_space<vmem>>, vector<18x128xf32>
    %14 = arith.truncf %13 : vector<18x128xf32> to vector<18x128xbf16>
    %15 = vector.extract_strided_slice %14 {offsets = [0, 0], sizes = [16, 128], strides = [1, 1]} : vector<18x128xbf16> to vector<16x128xbf16>
    %c0_19 = arith.constant 0 : index
    %c0_20 = arith.constant 0 : index
    %c0_21 = arith.constant 0 : index
    %16 = vector.load %arg2[%c0_19, %c0_20, %c0_21] : memref<3x128x128xbf16, #tpu.memory_space<vmem>>, vector<1x128x128xbf16>
    %17 = vector.shape_cast %16 : vector<1x128x128xbf16> to vector<128x128xbf16>
    %cst_22 = arith.constant dense<0.000000e+00> : vector<16x128xf32>
    %18 = tpu.matmul %15, %17, %cst_22 {dimension_numbers = #tpu.dot_dimension_numbers<[1], [0], [0], [1], [0, 0, 1, 1], [], []>} : vector<16x128xbf16>, vector<128x128xbf16>, vector<16x128xf32> -> vector<16x128xf32>
    %19 = vector.extract_strided_slice %14 {offsets = [1, 0], sizes = [16, 128], strides = [1, 1]} : vector<18x128xbf16> to vector<16x128xbf16>
    %c1_23 = arith.constant 1 : index
    %c0_24 = arith.constant 0 : index
    %c0_25 = arith.constant 0 : index
    %20 = vector.load %arg2[%c1_23, %c0_24, %c0_25] : memref<3x128x128xbf16, #tpu.memory_space<vmem>>, vector<1x128x128xbf16>
    %21 = vector.shape_cast %20 : vector<1x128x128xbf16> to vector<128x128xbf16>
    %cst_26 = arith.constant dense<0.000000e+00> : vector<16x128xf32>
    %22 = tpu.matmul %19, %21, %cst_26 {dimension_numbers = #tpu.dot_dimension_numbers<[1], [0], [0], [1], [0, 0, 1, 1], [], []>} : vector<16x128xbf16>, vector<128x128xbf16>, vector<16x128xf32> -> vector<16x128xf32>
    %23 = arith.addf %18, %22 : vector<16x128xf32>
    %24 = vector.extract_strided_slice %14 {offsets = [2, 0], sizes = [16, 128], strides = [1, 1]} : vector<18x128xbf16> to vector<16x128xbf16>
    %c2 = arith.constant 2 : index
    %c0_27 = arith.constant 0 : index
    %c0_28 = arith.constant 0 : index
    %25 = vector.load %arg2[%c2, %c0_27, %c0_28] : memref<3x128x128xbf16, #tpu.memory_space<vmem>>, vector<1x128x128xbf16>
    %26 = vector.shape_cast %25 : vector<1x128x128xbf16> to vector<128x128xbf16>
    %cst_29 = arith.constant dense<0.000000e+00> : vector<16x128xf32>
    %27 = tpu.matmul %24, %26, %cst_29 {dimension_numbers = #tpu.dot_dimension_numbers<[1], [0], [0], [1], [0, 0, 1, 1], [], []>} : vector<16x128xbf16>, vector<128x128xbf16>, vector<16x128xf32> -> vector<16x128xf32>
    %28 = arith.addf %23, %27 : vector<16x128xf32>
    %29 = vector.broadcast %11 : vector<1x128xf32> to vector<16x128xf32>
    %30 = arith.mulf %28, %29 : vector<16x128xf32>
    %31 = vector.broadcast %12 : vector<1x128xf32> to vector<16x128xf32>
    %32 = arith.addf %30, %31 : vector<16x128xf32>
    %cst_30 = arith.constant 0.000000e+00 : f32
    %33 = vector.broadcast %cst_30 : f32 to vector<16x128xf32>
    %34 = arith.maximumf %32, %33 : vector<16x128xf32>
    %c1_31 = arith.constant 1 : index
    %c0_32 = arith.constant 0 : index
    %35 = vector.load %arg16[%c1_31, %c0_32] : memref<18x128xf32, #tpu.memory_space<vmem>>, vector<16x128xf32>
    tpu.vector_store %arg16[%c1_31, %c0_32], %34 {strides = array<i32>} : memref<18x128xf32, #tpu.memory_space<vmem>>, vector<16x128xf32>,
    %c0_33 = arith.constant 0 : index
    %c0_34 = arith.constant 0 : index
    %36 = vector.load %arg6[%c0_33, %c0_34] : memref<1x256xf32, #tpu.memory_space<vmem>>, vector<1x256xf32>
    %c0_35 = arith.constant 0 : index
    %c0_36 = arith.constant 0 : index
    %37 = vector.load %arg7[%c0_35, %c0_36] : memref<1x256xf32, #tpu.memory_space<vmem>>, vector<1x256xf32>
    %c0_37 = arith.constant 0 : index
    %c0_38 = arith.constant 0 : index
    %38 = vector.load %arg16[%c0_37, %c0_38] : memref<18x128xf32, #tpu.memory_space<vmem>>, vector<18x128xf32>
    %39 = arith.truncf %38 : vector<18x128xf32> to vector<18x128xbf16>
    %40 = vector.extract_strided_slice %39 {offsets = [0, 0], sizes = [16, 128], strides = [1, 1]} : vector<18x128xbf16> to vector<16x128xbf16>
    %c0_39 = arith.constant 0 : index
    %c0_40 = arith.constant 0 : index
    %c0_41 = arith.constant 0 : index
    %41 = vector.load %arg5[%c0_39, %c0_40, %c0_41] : memref<3x128x256xbf16, #tpu.memory_space<vmem>>, vector<1x128x256xbf16>
    %42 = vector.shape_cast %41 : vector<1x128x256xbf16> to vector<128x256xbf16>
    %cst_42 = arith.constant dense<0.000000e+00> : vector<16x256xf32>
    %43 = tpu.matmul %40, %42, %cst_42 {dimension_numbers = #tpu.dot_dimension_numbers<[1], [0], [0], [1], [0, 0, 1, 1], [], []>} : vector<16x128xbf16>, vector<128x256xbf16>, vector<16x256xf32> -> vector<16x256xf32>
    %44 = vector.extract_strided_slice %39 {offsets = [1, 0], sizes = [16, 128], strides = [1, 1]} : vector<18x128xbf16> to vector<16x128xbf16>
    %c1_43 = arith.constant 1 : index
    %c0_44 = arith.constant 0 : index
    %c0_45 = arith.constant 0 : index
    %45 = vector.load %arg5[%c1_43, %c0_44, %c0_45] : memref<3x128x256xbf16, #tpu.memory_space<vmem>>, vector<1x128x256xbf16>
    %46 = vector.shape_cast %45 : vector<1x128x256xbf16> to vector<128x256xbf16>
    %cst_46 = arith.constant dense<0.000000e+00> : vector<16x256xf32>
    %47 = tpu.matmul %44, %46, %cst_46 {dimension_numbers = #tpu.dot_dimension_numbers<[1], [0], [0], [1], [0, 0, 1, 1], [], []>} : vector<16x128xbf16>, vector<128x256xbf16>, vector<16x256xf32> -> vector<16x256xf32>
    %48 = arith.addf %43, %47 : vector<16x256xf32>
    %49 = vector.extract_strided_slice %39 {offsets = [2, 0], sizes = [16, 128], strides = [1, 1]} : vector<18x128xbf16> to vector<16x128xbf16>
    %c2_47 = arith.constant 2 : index
    %c0_48 = arith.constant 0 : index
    %c0_49 = arith.constant 0 : index
    %50 = vector.load %arg5[%c2_47, %c0_48, %c0_49] : memref<3x128x256xbf16, #tpu.memory_space<vmem>>, vector<1x128x256xbf16>
    %51 = vector.shape_cast %50 : vector<1x128x256xbf16> to vector<128x256xbf16>
    %cst_50 = arith.constant dense<0.000000e+00> : vector<16x256xf32>
    %52 = tpu.matmul %49, %51, %cst_50 {dimension_numbers = #tpu.dot_dimension_numbers<[1], [0], [0], [1], [0, 0, 1, 1], [], []>} : vector<16x128xbf16>, vector<128x256xbf16>, vector<16x256xf32> -> vector<16x256xf32>
    %53 = arith.addf %48, %52 : vector<16x256xf32>
    %54 = vector.broadcast %36 : vector<1x256xf32> to vector<16x256xf32>
    %55 = arith.mulf %53, %54 : vector<16x256xf32>
    %56 = vector.broadcast %37 : vector<1x256xf32> to vector<16x256xf32>
    %57 = arith.addf %55, %56 : vector<16x256xf32>
    %cst_51 = arith.constant 0.000000e+00 : f32
    %58 = vector.broadcast %cst_51 : f32 to vector<16x256xf32>
    %59 = arith.maximumf %57, %58 : vector<16x256xf32>
    %cst_52 = arith.constant dense<0.000000e+00> : vector<256xf32>
    %60 = vector.multi_reduction <add>, %59, %cst_52 [0] : vector<16x256xf32> to vector<256xf32>
    %61 = vector.shape_cast %60 : vector<256xf32> to vector<1x256xf32>
    %c0_53 = arith.constant 0 : index
    %c0_54 = arith.constant 0 : index
    %62 = vector.load %arg8[%c0_53, %c0_54] : memref<256x4xf32, #tpu.memory_space<vmem>>, vector<256x4xf32>
    %cst_55 = arith.constant dense<0.000000e+00> : vector<1x4xf32>
    %63 = tpu.matmul %61, %62, %cst_55 {dimension_numbers = #tpu.dot_dimension_numbers<[1], [0], [0], [1], [0, 0, 1, 1], [], []>} : vector<1x256xf32>, vector<256x4xf32>, vector<1x4xf32> -> vector<1x4xf32>
    %c0_56 = arith.constant 0 : index
    %c0_57 = arith.constant 0 : index
    %64 = vector.load %arg9[%c0_56, %c0_57] : memref<1x4xf32, #tpu.memory_space<vmem>>, vector<1x4xf32>
    %65 = arith.addf %63, %64 : vector<1x4xf32>
    %cst_58 = arith.constant 0.000000e+00 : f32
    %66 = vector.broadcast %cst_58 : f32 to vector<1x4xf32>
    %67 = arith.maximumf %65, %66 : vector<1x4xf32>
    %c0_59 = arith.constant 0 : index
    %c0_60 = arith.constant 0 : index
    %68 = vector.load %arg10[%c0_59, %c0_60] : memref<4x256xf32, #tpu.memory_space<vmem>>, vector<4x256xf32>
    %cst_61 = arith.constant dense<0.000000e+00> : vector<1x256xf32>
    %69 = tpu.matmul %67, %68, %cst_61 {dimension_numbers = #tpu.dot_dimension_numbers<[1], [0], [0], [1], [0, 0, 1, 1], [], []>} : vector<1x4xf32>, vector<4x256xf32>, vector<1x256xf32> -> vector<1x256xf32>
    %c0_62 = arith.constant 0 : index
    %c0_63 = arith.constant 0 : index
    %70 = vector.load %arg11[%c0_62, %c0_63] : memref<1x256xf32, #tpu.memory_space<vmem>>, vector<1x256xf32>
    %71 = arith.addf %69, %70 : vector<1x256xf32>
    %cst_64 = arith.constant 0.000000e+00 : f32
    %72 = vector.broadcast %cst_64 : f32 to vector<1x256xf32>
    %73 = arith.subf %72, %71 : vector<1x256xf32>
    %74 = math.exp %73 : vector<1x256xf32>
    %cst_65 = arith.constant 1.000000e+00 : f32
    %75 = vector.broadcast %cst_65 : f32 to vector<1x256xf32>
    %76 = arith.addf %75, %74 : vector<1x256xf32>
    %cst_66 = arith.constant 1.000000e+00 : f32
    %77 = vector.broadcast %cst_66 : f32 to vector<1x256xf32>
    %78 = arith.divf %77, %76 : vector<1x256xf32>
    %79 = vector.broadcast %78 : vector<1x256xf32> to vector<16x256xf32>
    %80 = arith.mulf %59, %79 : vector<16x256xf32>
    %81 = arith.truncf %9 : vector<16x128xf32> to vector<16x128xbf16>
    %c0_67 = arith.constant 0 : index
    %c0_68 = arith.constant 0 : index
    %82 = vector.load %arg12[%c0_67, %c0_68] : memref<128x256xbf16, #tpu.memory_space<vmem>>, vector<128x256xbf16>
    %cst_69 = arith.constant dense<0.000000e+00> : vector<16x256xf32>
    %83 = tpu.matmul %81, %82, %cst_69 {dimension_numbers = #tpu.dot_dimension_numbers<[1], [0], [0], [1], [0, 0, 1, 1], [], []>} : vector<16x128xbf16>, vector<128x256xbf16>, vector<16x256xf32> -> vector<16x256xf32>
    %c0_70 = arith.constant 0 : index
    %c0_71 = arith.constant 0 : index
    %84 = vector.load %arg13[%c0_70, %c0_71] : memref<1x256xf32, #tpu.memory_space<vmem>>, vector<1x256xf32>
    %85 = vector.broadcast %84 : vector<1x256xf32> to vector<16x256xf32>
    %86 = arith.addf %83, %85 : vector<16x256xf32>
    %87 = arith.addf %80, %86 : vector<16x256xf32>
    %c0_72 = arith.constant 0 : index
    %c0_73 = arith.constant 0 : index
    %c0_74 = arith.constant 0 : index
    %88 = vector.load %arg14[%c0_72, %c0_73, %c0_74] : memref<1x16x256xf32, #tpu.memory_space<vmem>>, vector<1x16x256xf32>
    %89 = vector.shape_cast %88 : vector<1x16x256xf32> to vector<16x256xf32>
    %90 = vector.shape_cast %87 : vector<16x256xf32> to vector<1x16x256xf32>
    tpu.vector_store %arg14[%c0_72, %c0_73, %c0_74], %90 {strides = array<i32>} : memref<1x16x256xf32, #tpu.memory_space<vmem>>, vector<1x16x256xf32>,
    return
  }
  func.func @transform_0(%arg0: i32) -> (i32, i32, i32) {
    %c0_i32 = arith.constant 0 : i32
    %c0_i32_0 = arith.constant 0 : i32
    %c0_i32_1 = arith.constant 0 : i32
    return %arg0, %c0_i32, %c0_i32_0 : i32, i32, i32
  }
  func.func @transform_1(%arg0: i32) -> (i32, i32, i32) {
    %c0_i32 = arith.constant 0 : i32
    %c0_i32_0 = arith.constant 0 : i32
    %c0_i32_1 = arith.constant 0 : i32
    %c0_i32_2 = arith.constant 0 : i32
    return %c0_i32, %c0_i32_0, %c0_i32_1 : i32, i32, i32
  }
  func.func @transform_2(%arg0: i32) -> (i32, i32) {
    %c0_i32 = arith.constant 0 : i32
    %c0_i32_0 = arith.constant 0 : i32
    %c0_i32_1 = arith.constant 0 : i32
    return %c0_i32, %c0_i32_0 : i32, i32
  }
  func.func @transform_3(%arg0: i32) -> (i32, i32) {
    %c0_i32 = arith.constant 0 : i32
    %c0_i32_0 = arith.constant 0 : i32
    %c0_i32_1 = arith.constant 0 : i32
    return %c0_i32, %c0_i32_0 : i32, i32
  }
  func.func @transform_4(%arg0: i32) -> (i32, i32, i32) {
    %c0_i32 = arith.constant 0 : i32
    %c0_i32_0 = arith.constant 0 : i32
    %c0_i32_1 = arith.constant 0 : i32
    %c0_i32_2 = arith.constant 0 : i32
    return %c0_i32, %c0_i32_0, %c0_i32_1 : i32, i32, i32
  }
  func.func @transform_5(%arg0: i32) -> (i32, i32) {
    %c0_i32 = arith.constant 0 : i32
    %c0_i32_0 = arith.constant 0 : i32
    %c0_i32_1 = arith.constant 0 : i32
    return %c0_i32, %c0_i32_0 : i32, i32
  }
  func.func @transform_6(%arg0: i32) -> (i32, i32) {
    %c0_i32 = arith.constant 0 : i32
    %c0_i32_0 = arith.constant 0 : i32
    %c0_i32_1 = arith.constant 0 : i32
    return %c0_i32, %c0_i32_0 : i32, i32
  }
  func.func @transform_7(%arg0: i32) -> (i32, i32) {
    %c0_i32 = arith.constant 0 : i32
    %c0_i32_0 = arith.constant 0 : i32
    %c0_i32_1 = arith.constant 0 : i32
    return %c0_i32, %c0_i32_0 : i32, i32
  }
  func.func @transform_8(%arg0: i32) -> (i32, i32) {
    %c0_i32 = arith.constant 0 : i32
    %c0_i32_0 = arith.constant 0 : i32
    %c0_i32_1 = arith.constant 0 : i32
    return %c0_i32, %c0_i32_0 : i32, i32
  }
  func.func @transform_9(%arg0: i32) -> (i32, i32) {
    %c0_i32 = arith.constant 0 : i32
    %c0_i32_0 = arith.constant 0 : i32
    %c0_i32_1 = arith.constant 0 : i32
    return %c0_i32, %c0_i32_0 : i32, i32
  }
  func.func @transform_10(%arg0: i32) -> (i32, i32) {
    %c0_i32 = arith.constant 0 : i32
    %c0_i32_0 = arith.constant 0 : i32
    %c0_i32_1 = arith.constant 0 : i32
    return %c0_i32, %c0_i32_0 : i32, i32
  }
  func.func @transform_11(%arg0: i32) -> (i32, i32) {
    %c0_i32 = arith.constant 0 : i32
    %c0_i32_0 = arith.constant 0 : i32
    %c0_i32_1 = arith.constant 0 : i32
    return %c0_i32, %c0_i32_0 : i32, i32
  }
  func.func @transform_12(%arg0: i32) -> (i32, i32) {
    %c0_i32 = arith.constant 0 : i32
    %c0_i32_0 = arith.constant 0 : i32
    %c0_i32_1 = arith.constant 0 : i32
    return %c0_i32, %c0_i32_0 : i32, i32
  }
  func.func @transform_13(%arg0: i32) -> (i32, i32, i32) {
    %c0_i32 = arith.constant 0 : i32
    %c0_i32_0 = arith.constant 0 : i32
    %c0_i32_1 = arith.constant 0 : i32
    return %arg0, %c0_i32, %c0_i32_0 : i32, i32, i32
  }
}

</mosaic_0001>

<llo_original>
// kernel: tile.43
$region0: #{tile.43}
  #allocation0 [shape = 's32[1]{0}', space=sflag, size = 0x4, scoped, tag = 'scoped memory for tile.43']
  %s0 = inlined_call_operand.vmem [shape: f32[8], index: 0, kind: input, shape index: {}]
  %s1 = inlined_call_operand.vmem [shape: f32[16,8], index: 1, kind: output, shape index: {}]
  // Predicated region
  $region2: #{tile.43} parent=0 // pred_check
    _
  $region3: #{tile.43} parent=0 // pred_check_branch
    %3 = sbr.rel (0) target = $region5
  $region4: #{tile.43} parent=0 // pred_region
    _
  $region5: #{tile.43} parent=0 // pred_fallthru
    _
  %v4 = vld [vmem:[%s0] ss:$0 sm:$0xff]
  %5 = vst [vmem:[%s1] sm:$0xff] %v4
  %s6 = scalar_lea.vmem %s1, 8
  %7 = vst [vmem:[%s6] sm:$0xff] %v4

// kernel: tile.44
$region0: #{tile.44}
  %s0 = inlined_call_operand.vmem [shape: f32[16,8], index: 0, kind: input, shape index: {}]
  %s1 = inlined_call_operand.vmem [shape: f32[1,128], index: 1, kind: output, shape index: {}]
  $region1: #{tile.44} parent=0
    #allocation0 [shape = 'u8[4096]{0}', space=vmem, size = 0x1000, scoped, tag = 'scoped mem for output reshape']
    %v2 = vld [vmem:[%s0] sm:$0x1]
    %vm3 = vcmask 64512
    %4 = vst.msk [vmem:[#allocation0] sm:$0x1] %vm3, %v2
    %s5 = scalar_lea.vmem %s0, 15
    %v6 = vld [vmem:[%s5] sm:$0x1]
    %7 = vrot.lane.b32.xlu0 %v6, 120
    %v8 = vpop.permute.xlu0 %7
    %vm9 = vcmask 1048512
    %10 = vst.msk [vmem:[#allocation0] sm:$0x1] %vm9, %v8
    %s11 = scalar_lea.vmem %s0, 14
    %v12 = vld [vmem:[%s11] sm:$0x1]
    %13 = vrot.lane.b32.xlu0 %v12, 112
    %v14 = vpop.permute.xlu0 %13
    %vm15 = vcmask 982912
    %16 = vst.msk [vmem:[#allocation0] sm:$0x1] %vm15, %v14
    %s17 = scalar_lea.vmem %s0, 13
    %v18 = vld [vmem:[%s17] sm:$0x1]
    %19 = vrot.lane.b32.xlu0 %v18, 104
    %v20 = vpop.permute.xlu0 %19
    %vm21 = vcmask 917312
    %22 = vst.msk [vmem:[#allocation0] sm:$0x1] %vm21, %v20
    %s23 = scalar_lea.vmem %s0, 12
    %v24 = vld [vmem:[%s23] sm:$0x1]
    %25 = vrot.lane.b32.xlu0 %v24, 96
    %v26 = vpop.permute.xlu0 %25
    %vm27 = vcmask 851712
    %28 = vst.msk [vmem:[#allocation0] sm:$0x1] %vm27, %v26
    %s29 = scalar_lea.vmem %s0, 11
    %v30 = vld [vmem:[%s29] sm:$0x1]
    %31 = vrot.lane.b32.xlu0 %v30, 88
    %v32 = vpop.permute.xlu0 %31
    %vm33 = vcmask 786112
    %34 = vst.msk [vmem:[#allocation0] sm:$0x1] %vm33, %v32
    %s35 = scalar_lea.vmem %s0, 10
    %v36 = vld [vmem:[%s35] sm:$0x1]
    %37 = vrot.lane.b32.xlu0 %v36, 80
    %v38 = vpop.permute.xlu0 %37
    %vm39 = vcmask 720512
    %40 = vst.msk [vmem:[#allocation0] sm:$0x1] %vm39, %v38
    %s41 = scalar_lea.vmem %s0, 9
    %v42 = vld [vmem:[%s41] sm:$0x1]
    %43 = vrot.lane.b32.xlu0 %v42, 72
    %v44 = vpop.permute.xlu0 %43
    %vm45 = vcmask 654912
    %46 = vst.msk [vmem:[#allocation0] sm:$0x1] %vm45, %v44
    %s47 = scalar_lea.vmem %s0, 8
    %v48 = vld [vmem:[%s47] sm:$0x1]
    %49 = vrot.lane.b32.xlu0 %v48, 64
    %v50 = vpop.permute.xlu0 %49
    %vm51 = vcmask 589312
    %52 = vst.msk [vmem:[#allocation0] sm:$0x1] %vm51, %v50
    %s53 = scalar_lea.vmem %s0, 7
    %v54 = vld [vmem:[%s53] sm:$0x1]
    %55 = vrot.lane.b32.xlu0 %v54, 56
    %v56 = vpop.permute.xlu0 %55
    %vm57 = vcmask 523712
    %58 = vst.msk [vmem:[#allocation0] sm:$0x1] %vm57, %v56
    %s59 = scalar_lea.vmem %s0, 6
    %v60 = vld [vmem:[%s59] sm:$0x1]
    %61 = vrot.lane.b32.xlu0 %v60, 48
    %v62 = vpop.permute.xlu0 %61
    %vm63 = vcmask 458112
    %64 = vst.msk [vmem:[#allocation0] sm:$0x1] %vm63, %v62
    %s65 = scalar_lea.vmem %s0, 5
    %v66 = vld [vmem:[%s65] sm:$0x1]
    %67 = vrot.lane.b32.xlu0 %v66, 40
    %v68 = vpop.permute.xlu0 %67
    %vm69 = vcmask 392512
    %70 = vst.msk [vmem:[#allocation0] sm:$0x1] %vm69, %v68
    %s71 = scalar_lea.vmem %s0, 4
    %v72 = vld [vmem:[%s71] sm:$0x1]
    %73 = vrot.lane.b32.xlu0 %v72, 32
    %v74 = vpop.permute.xlu0 %73
    %vm75 = vcmask 326912
    %76 = vst.msk [vmem:[#allocation0] sm:$0x1] %vm75, %v74
    %s77 = scalar_lea.vmem %s0, 3
    %v78 = vld [vmem:[%s77] sm:$0x1]
    %79 = vrot.lane.b32.xlu0 %v78, 24
    %v80 = vpop.permute.xlu0 %79
    %vm81 = vcmask 261312
    %82 = vst.msk [vmem:[#allocation0] sm:$0x1] %vm81, %v80
    %s83 = scalar_lea.vmem %s0, 2
    %v84 = vld [vmem:[%s83] sm:$0x1]
    %85 = vrot.lane.b32.xlu0 %v84, 16
    %v86 = vpop.permute.xlu0 %85
    %vm87 = vcmask 195712
    %88 = vst.msk [vmem:[#allocation0] sm:$0x1] %vm87, %v86
    %s89 = scalar_lea.vmem %s0, 1
    %v90 = vld [vmem:[%s89] sm:$0x1]
    %91 = vrot.lane.b32.xlu0 %v90, 8
    %v92 = vpop.permute.xlu0 %91
    %vm93 = vcmask 130112
    %94 = vst.msk [vmem:[#allocation0] sm:$0x1] %vm93, %v92
    %s96 = sshllo.u32 0, 1
    %v98 = vld [vmem:[#allocation0] sm:%s96]
    %s99 = sshllo.u32 0, 1
    %100 = vst [vmem:[%s1] sm:%s99] %v98

// kernel: tile.53
$region0: #{tile.53}
  #allocation0 [shape = 's32[1]{0}', space=sflag, size = 0x4, scoped, tag = 'scoped memory for tile.53']
  %s0 = inlined_call_operand.vmem [shape: f32[16], index: 0, kind: input, shape index: {}]
  %s1 = inlined_call_operand.vmem [shape: f32[16,16], index: 1, kind: output, shape index: {}]
  // Predicated region
  $region2: #{tile.53} parent=0 // pred_check
    _
  $region3: #{tile.53} parent=0 // pred_check_branch
    %3 = sbr.rel (0) target = $region5
  $region4: #{tile.53} parent=0 // pred_region
    _
  $region5: #{tile.53} parent=0 // pred_fallthru
    _
  %v4 = vld [vmem:[%s0] ss:$0 sm:$0xff]
  %5 = vst [vmem:[%s1] sm:$0xff] %v4
  %s6 = scalar_lea.vmem %s1, 8
  %7 = vst [vmem:[%s6] sm:$0xff] %v4

// kernel: tile.54
$region0: #{tile.54}
  %s0 = inlined_call_operand.vmem [shape: f32[16,16], index: 0, kind: input, shape index: {}]
  %s1 = inlined_call_operand.vmem [shape: f32[1,256], index: 1, kind: output, shape index: {}]
  $region1: #{tile.54} parent=0
    #allocation0 [shape = 'u8[8192]{0}', space=vmem, size = 0x2000, scoped, tag = 'scoped mem for output reshape']
    %s2 = smov 3
    %v3 = vld [vmem:[%s0] ss:$8 sm:%s2]
    %vm4 = vcmask 130048
    %5 = vst.msk [vmem:[#allocation0] ss:$8 sm:$0x3] %vm4, %v3
    %s6 = scalar_lea.vmem %s0, 7
    %s7 = smov 3
    %v8 = vld [vmem:[%s6] ss:$8 sm:%s7]
    %9 = vrot.lane.b32.xlu0 %v8, 112
    %v10 = vpop.permute.xlu0 %9
    %vm11 = vcmask 1048448
    %12 = vst.msk [vmem:[#allocation0] ss:$8 sm:$0x3] %vm11, %v10
    %s13 = scalar_lea.vmem %s0, 6
    %s14 = smov 3
    %v15 = vld [vmem:[%s13] ss:$8 sm:%s14]
    %16 = vrot.lane.b32.xlu0 %v15, 96
    %v17 = vpop.permute.xlu0 %16
    %vm18 = vcmask 917248
    %19 = vst.msk [vmem:[#allocation0] ss:$8 sm:$0x3] %vm18, %v17
    %s20 = scalar_lea.vmem %s0, 5
    %s21 = smov 3
    %v22 = vld [vmem:[%s20] ss:$8 sm:%s21]
    %23 = vrot.lane.b32.xlu0 %v22, 80
    %v24 = vpop.permute.xlu0 %23
    %vm25 = vcmask 786048
    %26 = vst.msk [vmem:[#allocation0] ss:$8 sm:$0x3] %vm25, %v24
    %s27 = scalar_lea.vmem %s0, 4
    %s28 = smov 3
    %v29 = vld [vmem:[%s27] ss:$8 sm:%s28]
    %30 = vrot.lane.b32.xlu0 %v29, 64
    %v31 = vpop.permute.xlu0 %30
    %vm32 = vcmask 654848
    %33 = vst.msk [vmem:[#allocation0] ss:$8 sm:$0x3] %vm32, %v31
    %s34 = scalar_lea.vmem %s0, 3
    %s35 = smov 3
    %v36 = vld [vmem:[%s34] ss:$8 sm:%s35]
    %37 = vrot.lane.b32.xlu0 %v36, 48
    %v38 = vpop.permute.xlu0 %37
    %vm39 = vcmask 523648
    %40 = vst.msk [vmem:[#allocation0] ss:$8 sm:$0x3] %vm39, %v38
    %s41 = scalar_lea.vmem %s0, 2
    %s42 = smov 3
    %v43 = vld [vmem:[%s41] ss:$8 sm:%s42]
    %44 = vrot.lane.b32.xlu0 %v43, 32
    %v45 = vpop.permute.xlu0 %44
    %vm46 = vcmask 392448
    %47 = vst.msk [vmem:[#allocation0] ss:$8 sm:$0x3] %vm46, %v45
    %s48 = scalar_lea.vmem %s0, 1
    %s49 = smov 3
    %v50 = vld [vmem:[%s48] ss:$8 sm:%s49]
    %51 = vrot.lane.b32.xlu0 %v50, 16
    %v52 = vpop.permute.xlu0 %51
    %vm53 = vcmask 261248
    %54 = vst.msk [vmem:[#allocation0] ss:$8 sm:$0x3] %vm53, %v52
    %s56 = sshllo.u32 0, 1
    %v58 = vld [vmem:[#allocation0] sm:%s56]
    %s59 = sshllo.u32 0, 1
    %60 = vst [vmem:[%s1] sm:%s59] %v58
    %s61 = scalar_lea.vmem [#allocation0], 8
    %v62 = vld [vmem:[%s61] sm:%s56]
    %s63 = sshllo.u32 0, 1
    %s64 = scalar_lea.vmem %s1, 1
    %65 = vst [vmem:[%s64] sm:%s63] %v62

// kernel: tile.69
$region0: #{tile.69}
  %s0 = inlined_call_operand.vmem [shape: f32[4,16,16], index: 0, kind: input, shape index: {}]
  %s1 = inlined_call_operand.vmem [shape: f32[4,256], index: 1, kind: output, shape index: {}]
  $region1: #{tile.69} parent=0
    #allocation0 [shape = 'u8[8192]{0}', space=vmem, size = 0x2000, scoped, tag = 'scoped mem for output reshape']
    %v2 = vld [vmem:[%s0] ss:$8 sm:$0xf]
    %v3 = vld [vmem:[%s0] ss:$8 sm:$0xf0]
    %vm4 = vcmask 1047556
    %v5 = vsel %vm4, %v3, %v2
    %vm6 = vcmask 130048
    %7 = vst.msk [vmem:[#allocation0] ss:$8 sm:$0x3] %vm6, %v5
    %s8 = scalar_lea.vmem [#allocation0], 4294967281
    %9 = vst.msk [vmem:[%s8] ss:$8 sm:$0xc] %vm6, %v5
    %s10 = scalar_lea.vmem [#allocation0], 4294967266
    %11 = vst.msk [vmem:[%s10] ss:$8 sm:$0x30] %vm6, %v5
    %s12 = scalar_lea.vmem [#allocation0], 4294967251
    %13 = vst.msk [vmem:[%s12] ss:$8 sm:$0xc0] %vm6, %v5
    %s14 = scalar_lea.vmem %s0, 7
    %s15 = smov 3
    %v16 = vld [vmem:[%s14] ss:$16 sm:%s15]
    %s17 = scalar_lea.vmem %s0, 7
    %s18 = smov 12
    %v19 = vld [vmem:[%s17] ss:$16 sm:%s18]
    %vm20 = vcmask 1043458
    %v21 = vsel %vm20, %v19, %v16
    %s22 = scalar_lea.vmem %s0, 4294967247
    %s23 = smov 48
    %v24 = vld [vmem:[%s22] ss:$16 sm:%s23]
    %vm25 = vcmask 1045508
    %v26 = vsel %vm25, %v24, %v21
    %s27 = scalar_lea.vmem %s0, 4294967247
    %s28 = smov 192
    %v29 = vld [vmem:[%s27] ss:$16 sm:%s28]
    %vm30 = vcmask 1047558
    %v31 = vsel %vm30, %v29, %v26
    %32 = vrot.lane.b32.xlu0 %v31, 112
    %v33 = vpop.permute.xlu0 %32
    %vm34 = vcmask 1048448
    %35 = vst.msk [vmem:[#allocation0] sm:$0xf] %vm34, %v33
    %s36 = scalar_lea.vmem [#allocation0], 4
    %37 = vst.msk [vmem:[%s36] sm:$0xf0] %vm34, %v33
    %s38 = scalar_lea.vmem %s0, 6
    %s39 = smov 3
    %v40 = vld [vmem:[%s38] ss:$16 sm:%s39]
    %s41 = scalar_lea.vmem %s0, 6
    %s42 = smov 12
    %v43 = vld [vmem:[%s41] ss:$16 sm:%s42]
    %vm44 = vcmask 1043458
    %v45 = vsel %vm44, %v43, %v40
    %s46 = scalar_lea.vmem %s0, 4294967246
    %s47 = smov 48
    %v48 = vld [vmem:[%s46] ss:$16 sm:%s47]
    %vm49 = vcmask 1045508
    %v50 = vsel %vm49, %v48, %v45
    %s51 = scalar_lea.vmem %s0, 4294967246
    %s52 = smov 192
    %v53 = vld [vmem:[%s51] ss:$16 sm:%s52]
    %vm54 = vcmask 1047558
    %v55 = vsel %vm54, %v53, %v50
    %56 = vrot.lane.b32.xlu0 %v55, 96
    %v57 = vpop.permute.xlu0 %56
    %vm58 = vcmask 917248
    %59 = vst.msk [vmem:[#allocation0] sm:$0xf] %vm58, %v57
    %s60 = scalar_lea.vmem [#allocation0], 4
    %61 = vst.msk [vmem:[%s60] sm:$0xf0] %vm58, %v57
    %s62 = scalar_lea.vmem %s0, 5
    %s63 = smov 3
    %v64 = vld [vmem:[%s62] ss:$16 sm:%s63]
    %s65 = scalar_lea.vmem %s0, 5
    %s66 = smov 12
    %v67 = vld [vmem:[%s65] ss:$16 sm:%s66]
    %vm68 = vcmask 1043458
    %v69 = vsel %vm68, %v67, %v64
    %s70 = scalar_lea.vmem %s0, 4294967245
    %s71 = smov 48
    %v72 = vld [vmem:[%s70] ss:$16 sm:%s71]
    %vm73 = vcmask 1045508
    %v74 = vsel %vm73, %v72, %v69
    %s75 = scalar_lea.vmem %s0, 4294967245
    %s76 = smov 192
    %v77 = vld [vmem:[%s75] ss:$16 sm:%s76]
    %vm78 = vcmask 1047558
    %v79 = vsel %vm78, %v77, %v74
    %80 = vrot.lane.b32.xlu0 %v79, 80
    %v81 = vpop.permute.xlu0 %80
    %vm82 = vcmask 786048
    %83 = vst.msk [vmem:[#allocation0] sm:$0xf] %vm82, %v81
    %s84 = scalar_lea.vmem [#allocation0], 4
    %85 = vst.msk [vmem:[%s84] sm:$0xf0] %vm82, %v81
    %s86 = scalar_lea.vmem %s0, 4
    %s87 = smov 3
    %v88 = vld [vmem:[%s86] ss:$16 sm:%s87]
    %s89 = scalar_lea.vmem %s0, 4
    %s90 = smov 12
    %v91 = vld [vmem:[%s89] ss:$16 sm:%s90]
    %vm92 = vcmask 1043458
    %v93 = vsel %vm92, %v91, %v88
    %s94 = scalar_lea.vmem %s0, 4294967244
    %s95 = smov 48
    %v96 = vld [vmem:[%s94] ss:$16 sm:%s95]
    %vm97 = vcmask 1045508
    %v98 = vsel %vm97, %v96, %v93
    %s99 = scalar_lea.vmem %s0, 4294967244
    %s100 = smov 192
    %v101 = vld [vmem:[%s99] ss:$16 sm:%s100]
    %vm102 = vcmask 1047558
    %v103 = vsel %vm102, %v101, %v98
    %104 = vrot.lane.b32.xlu0 %v103, 64
    %v105 = vpop.permute.xlu0 %104
    %vm106 = vcmask 654848
    %107 = vst.msk [vmem:[#allocation0] sm:$0xf] %vm106, %v105
    %s108 = scalar_lea.vmem [#allocation0], 4
    %109 = vst.msk [vmem:[%s108] sm:$0xf0] %vm106, %v105
    %s110 = scalar_lea.vmem %s0, 3
    %s111 = smov 3
    %v112 = vld [vmem:[%s110] ss:$16 sm:%s111]
    %s113 = scalar_lea.vmem %s0, 3
    %s114 = smov 12
    %v115 = vld [vmem:[%s113] ss:$16 sm:%s114]
    %vm116 = vcmask 1043458
    %v117 = vsel %vm116, %v115, %v112
    %s118 = scalar_lea.vmem %s0, 4294967243
    %s119 = smov 48
    %v120 = vld [vmem:[%s118] ss:$16 sm:%s119]
    %vm121 = vcmask 1045508
    %v122 = vsel %vm121, %v120, %v117
    %s123 = scalar_lea.vmem %s0, 4294967243
    %s124 = smov 192
    %v125 = vld [vmem:[%s123] ss:$16 sm:%s124]
    %vm126 = vcmask 1047558
    %v127 = vsel %vm126, %v125, %v122
    %128 = vrot.lane.b32.xlu0 %v127, 48
    %v129 = vpop.permute.xlu0 %128
    %vm130 = vcmask 523648
    %131 = vst.msk [vmem:[#allocation0] sm:$0xf] %vm130, %v129
    %s132 = scalar_lea.vmem [#allocation0], 4
    %133 = vst.msk [vmem:[%s132] sm:$0xf0] %vm130, %v129
    %s134 = scalar_lea.vmem %s0, 2
    %s135 = smov 3
    %v136 = vld [vmem:[%s134] ss:$16 sm:%s135]
    %s137 = scalar_lea.vmem %s0, 2
    %s138 = smov 12
    %v139 = vld [vmem:[%s137] ss:$16 sm:%s138]
    %vm140 = vcmask 1043458
    %v141 = vsel %vm140, %v139, %v136
    %s142 = scalar_lea.vmem %s0, 4294967242
    %s143 = smov 48
    %v144 = vld [vmem:[%s142] ss:$16 sm:%s143]
    %vm145 = vcmask 1045508
    %v146 = vsel %vm145, %v144, %v141
    %s147 = scalar_lea.vmem %s0, 4294967242
    %s148 = smov 192
    %v149 = vld [vmem:[%s147] ss:$16 sm:%s148]
    %vm150 = vcmask 1047558
    %v151 = vsel %vm150, %v149, %v146
    %152 = vrot.lane.b32.xlu0 %v151, 32
    %v153 = vpop.permute.xlu0 %152
    %vm154 = vcmask 392448
    %155 = vst.msk [vmem:[#allocation0] sm:$0xf] %vm154, %v153
    %s156 = scalar_lea.vmem [#allocation0], 4
    %157 = vst.msk [vmem:[%s156] sm:$0xf0] %vm154, %v153
    %s158 = scalar_lea.vmem %s0, 1
    %s159 = smov 3
    %v160 = vld [vmem:[%s158] ss:$16 sm:%s159]
    %s161 = scalar_lea.vmem %s0, 1
    %s162 = smov 12
    %v163 = vld [vmem:[%s161] ss:$16 sm:%s162]
    %vm164 = vcmask 1043458
    %v165 = vsel %vm164, %v163, %v160
    %s166 = scalar_lea.vmem %s0, 4294967241
    %s167 = smov 48
    %v168 = vld [vmem:[%s166] ss:$16 sm:%s167]
    %vm169 = vcmask 1045508
    %v170 = vsel %vm169, %v168, %v165
    %s171 = scalar_lea.vmem %s0, 4294967241
    %s172 = smov 192
    %v173 = vld [vmem:[%s171] ss:$16 sm:%s172]
    %vm174 = vcmask 1047558
    %v175 = vsel %vm174, %v173, %v170
    %176 = vrot.lane.b32.xlu0 %v175, 16
    %v177 = vpop.permute.xlu0 %176
    %vm178 = vcmask 261248
    %179 = vst.msk [vmem:[#allocation0] sm:$0xf] %vm178, %v177
    %s180 = scalar_lea.vmem [#allocation0], 4
    %181 = vst.msk [vmem:[%s180] sm:$0xf0] %vm178, %v177
    %s183 = sshllo.u32 0, 4
    %v185 = vld [vmem:[#allocation0] sm:%s183]
    %s186 = sshllo.u32 0, 4
    %187 = vst [vmem:[%s1] sm:%s186] %v185
    %s188 = scalar_lea.vmem [#allocation0], 8
    %v189 = vld [vmem:[%s188] sm:%s183]
    %s190 = sshllo.u32 0, 4
    %s191 = scalar_lea.vmem %s1, 4
    %192 = vst [vmem:[%s191] sm:%s190] %v189

// kernel: basic_block_forward.1
$region0: #{basic_block_forward.1}
  #allocation0 [shape = 'u32[]', space=smem, size = 0x4, offset = 0x4, fixed_abs, tag = 'smem constant byte address 0x4 - core index']
  #allocation1 [shape = 'u32[144,128]{1,0:T(1,128)}', space=vmem, size = 0x12000, scoped, tag = 'internal scratch']
  #allocation2 [shape = 'f32[18,128]{1,0:T(8,128)}', space=vmem, size = 0x3000, scoped, tag = 'scratch operand']
  #allocation3 [shape = 'f32[18,128]{1,0:T(8,128)}', space=vmem, size = 0x3000, scoped, tag = 'scratch operand']
  %s0 = inlined_call_operand.vmem [shape: f32[2,16,128], index: 0, kind: input, shape index: {}]
  %s1 = inlined_call_operand.vmem [shape: bf16[3,128,128], index: 1, kind: input, shape index: {}]
  %s2 = inlined_call_operand.vmem [shape: f32[1,128], index: 2, kind: input, shape index: {}]
  %s3 = inlined_call_operand.vmem [shape: f32[1,128], index: 3, kind: input, shape index: {}]
  %s4 = inlined_call_operand.vmem [shape: bf16[3,128,256], index: 4, kind: input, shape index: {}]
  %s5 = inlined_call_operand.vmem [shape: f32[1,256], index: 5, kind: input, shape index: {}]
  %s6 = inlined_call_operand.vmem [shape: f32[1,256], index: 6, kind: input, shape index: {}]
  %s7 = inlined_call_operand.vmem [shape: f32[256,4], index: 7, kind: input, shape index: {}]
  %s8 = inlined_call_operand.vmem [shape: f32[1,4], index: 8, kind: input, shape index: {}]
  %s9 = inlined_call_operand.vmem [shape: f32[4,256], index: 9, kind: input, shape index: {}]
  %s10 = inlined_call_operand.vmem [shape: f32[1,256], index: 10, kind: input, shape index: {}]
  %s11 = inlined_call_operand.vmem [shape: bf16[128,256], index: 11, kind: input, shape index: {}]
  %s12 = inlined_call_operand.vmem [shape: f32[1,256], index: 12, kind: input, shape index: {}]
  %s13 = inlined_call_operand.vmem [shape: f32[2,16,256], index: 13, kind: output, shape index: {}]
  %s14 = sld [smem:[#allocation0]]
  $region85: #{basic_block_forward.1} parent=0
    _
  %s16 = ssub.s32 1, %s14
  %s17 = scalar_select 0, %s16, %s14
  loop: start=0, step=1, limit=4
  $region2: #{basic_block_forward.1} parent=0 // loop_pre_header
    _
  $region3: #{basic_block_forward.1} parent=0 // loop_header
    %s19 = sphi 0, %s23
    %p20 = scmp.ge.s32.totalorder %s19, 4
    %s29 = sphi 0, %s31
    %s32 = sphi 0, %s29
    %s33 = sphi 0, %s32
    %s49 = sphi 0, %s33
    %s53 = sphi 0, %s53
    %s55 = sphi 0, %s53
    %s56 = sphi 0, %s55
    %s70 = sphi 0, %s56
    %s74 = sphi 0, %s74
    %s76 = sphi 0, %s74
    %s77 = sphi 0, %s76
    %s91 = sphi 0, %s77
    %s95 = sphi 0, %s95
    %s97 = sphi 0, %s95
    %s98 = sphi 0, %s97
    %s112 = sphi 0, %s98
    %s116 = sphi 0, %s116
    %s118 = sphi 0, %s116
    %s119 = sphi 0, %s118
    %s133 = sphi 0, %s119
    %s137 = sphi 0, %s137
    %s139 = sphi 0, %s137
    %s140 = sphi 0, %s139
    %s154 = sphi 0, %s140
    %s158 = sphi 0, %s158
    %s160 = sphi 0, %s158
    %s161 = sphi 0, %s160
    %s175 = sphi 0, %s161
    %s179 = sphi 0, %s179
    %s181 = sphi 0, %s179
    %s182 = sphi 0, %s181
    %s196 = sphi 0, %s182
    %s200 = sphi 0, %s200
    %s202 = sphi 0, %s200
    %s203 = sphi 0, %s202
    %s217 = sphi 0, %s203
    %s221 = sphi 0, %s221
    %s223 = sphi 0, %s221
    %s224 = sphi 0, %s223
    %s238 = sphi 0, %s224
    %s242 = sphi 0, %s242
    %s244 = sphi 0, %s242
    %s245 = sphi 0, %s244
    %s259 = sphi 0, %s245
    %s263 = sphi 0, %s263
    %s265 = sphi 0, %s263
    %s266 = sphi 0, %s265
    %s280 = sphi 0, %s266
    %s284 = sphi 0, %s284
    %s286 = sphi 0, %s284
    %s287 = sphi 0, %s286
    %s301 = sphi 0, %s287
    %s307 = sphi 0, %s309
    %s310 = sphi 0, %s307
    %s311 = sphi 0, %s310
    %s327 = sphi 0, %s311
  $region4: #{basic_block_forward.1} parent=0 // loop_header_branch
    %22 = sbr.rel (%p20) target = $region8
  $region5: #{basic_block_forward.1} parent=0 // loop_body
    %s24 = ssub.s32 %s19, 1
    %s25 = ssub.s32 %s19, 2
    %s26 = sadd.s32 %s19, 1
    %s27 = ssub.s32 %s19, %s26
    %p28 = scmp.eq.s32.totalorder %s27, 0
    %s30 = sadd.s32 %s29, 1
    %s31 = scalar_select %p28, %s29, %s30
    %p34 = pneg %p28
    %p35 = scmp.eq.s32.totalorder %s19, 1
    %p36 = por %p34, %p35
    %p37 = scmp.ne.s32.totalorder %s29, %s32
    %p38 = scmp.eq.s32.totalorder %s19, 0
    %p39 = por %p37, %p38
    %p40 = scmp.ne.s32.totalorder %s29, %s32
    %p41 = scmp.eq.s32.totalorder %s24, 1
    %p42 = por %p40, %p41
    %p43 = scmp.ne.s32.totalorder %s32, %s33
    %p44 = scmp.eq.s32.totalorder %s24, 0
    %p45 = por %p43, %p44
    %p46 = scmp.ne.s32.totalorder %s32, %s33
    %p47 = scmp.eq.s32.totalorder %s25, 1
    %p48 = por %p46, %p47
    %p50 = scmp.ne.s32.totalorder %s33, %s49
    %p51 = scmp.eq.s32.totalorder %s25, 0
    %p52 = por %p50, %p51
    %s54 = sadd.s32 %s53, 1
    %p57 = scmp.eq.s32.totalorder %s19, 1
    %p58 = scmp.ne.s32.totalorder %s53, %s55
    %p59 = scmp.eq.s32.totalorder %s19, 0
    %p60 = por %p58, %p59
    %p61 = scmp.ne.s32.totalorder %s53, %s55
    %p62 = scmp.eq.s32.totalorder %s24, 1
    %p63 = por %p61, %p62
    %p64 = scmp.ne.s32.totalorder %s55, %s56
    %p65 = scmp.eq.s32.totalorder %s24, 0
    %p66 = por %p64, %p65
    %p67 = scmp.ne.s32.totalorder %s55, %s56
    %p68 = scmp.eq.s32.totalorder %s25, 1
    %p69 = por %p67, %p68
    %p71 = scmp.ne.s32.totalorder %s56, %s70
    %p72 = scmp.eq.s32.totalorder %s25, 0
    %p73 = por %p71, %p72
    %s75 = sadd.s32 %s74, 1
    %p78 = scmp.eq.s32.totalorder %s19, 1
    %p79 = scmp.ne.s32.totalorder %s74, %s76
    %p80 = scmp.eq.s32.totalorder %s19, 0
    %p81 = por %p79, %p80
    %p82 = scmp.ne.s32.totalorder %s74, %s76
    %p83 = scmp.eq.s32.totalorder %s24, 1
    %p84 = por %p82, %p83
    %p85 = scmp.ne.s32.totalorder %s76, %s77
    %p86 = scmp.eq.s32.totalorder %s24, 0
    %p87 = por %p85, %p86
    %p88 = scmp.ne.s32.totalorder %s76, %s77
    %p89 = scmp.eq.s32.totalorder %s25, 1
    %p90 = por %p88, %p89
    %p92 = scmp.ne.s32.totalorder %s77, %s91
    %p93 = scmp.eq.s32.totalorder %s25, 0
    %p94 = por %p92, %p93
    %s96 = sadd.s32 %s95, 1
    %p99 = scmp.eq.s32.totalorder %s19, 1
    %p100 = scmp.ne.s32.totalorder %s95, %s97
    %p101 = scmp.eq.s32.totalorder %s19, 0
    %p102 = por %p100, %p101
    %p103 = scmp.ne.s32.totalorder %s95, %s97
    %p104 = scmp.eq.s32.totalorder %s24, 1
    %p105 = por %p103, %p104
    %p106 = scmp.ne.s32.totalorder %s97, %s98
    %p107 = scmp.eq.s32.totalorder %s24, 0
    %p108 = por %p106, %p107
    %p109 = scmp.ne.s32.totalorder %s97, %s98
    %p110 = scmp.eq.s32.totalorder %s25, 1
    %p111 = por %p109, %p110
    %p113 = scmp.ne.s32.totalorder %s98, %s112
    %p114 = scmp.eq.s32.totalorder %s25, 0
    %p115 = por %p113, %p114
    %s117 = sadd.s32 %s116, 1
    %p120 = scmp.eq.s32.totalorder %s19, 1
    %p121 = scmp.ne.s32.totalorder %s116, %s118
    %p122 = scmp.eq.s32.totalorder %s19, 0
    %p123 = por %p121, %p122
    %p124 = scmp.ne.s32.totalorder %s116, %s118
    %p125 = scmp.eq.s32.totalorder %s24, 1
    %p126 = por %p124, %p125
    %p127 = scmp.ne.s32.totalorder %s118, %s119
    %p128 = scmp.eq.s32.totalorder %s24, 0
    %p129 = por %p127, %p128
    %p130 = scmp.ne.s32.totalorder %s118, %s119
    %p131 = scmp.eq.s32.totalorder %s25, 1
    %p132 = por %p130, %p131
    %p134 = scmp.ne.s32.totalorder %s119, %s133
    %p135 = scmp.eq.s32.totalorder %s25, 0
    %p136 = por %p134, %p135
    %s138 = sadd.s32 %s137, 1
    %p141 = scmp.eq.s32.totalorder %s19, 1
    %p142 = scmp.ne.s32.totalorder %s137, %s139
    %p143 = scmp.eq.s32.totalorder %s19, 0
    %p144 = por %p142, %p143
    %p145 = scmp.ne.s32.totalorder %s137, %s139
    %p146 = scmp.eq.s32.totalorder %s24, 1
    %p147 = por %p145, %p146
    %p148 = scmp.ne.s32.totalorder %s139, %s140
    %p149 = scmp.eq.s32.totalorder %s24, 0
    %p150 = por %p148, %p149
    %p151 = scmp.ne.s32.totalorder %s139, %s140
    %p152 = scmp.eq.s32.totalorder %s25, 1
    %p153 = por %p151, %p152
    %p155 = scmp.ne.s32.totalorder %s140, %s154
    %p156 = scmp.eq.s32.totalorder %s25, 0
    %p157 = por %p155, %p156
    %s159 = sadd.s32 %s158, 1
    %p162 = scmp.eq.s32.totalorder %s19, 1
    %p163 = scmp.ne.s32.totalorder %s158, %s160
    %p164 = scmp.eq.s32.totalorder %s19, 0
    %p165 = por %p163, %p164
    %p166 = scmp.ne.s32.totalorder %s158, %s160
    %p167 = scmp.eq.s32.totalorder %s24, 1
    %p168 = por %p166, %p167
    %p169 = scmp.ne.s32.totalorder %s160, %s161
    %p170 = scmp.eq.s32.totalorder %s24, 0
    %p171 = por %p169, %p170
    %p172 = scmp.ne.s32.totalorder %s160, %s161
    %p173 = scmp.eq.s32.totalorder %s25, 1
    %p174 = por %p172, %p173
    %p176 = scmp.ne.s32.totalorder %s161, %s175
    %p177 = scmp.eq.s32.totalorder %s25, 0
    %p178 = por %p176, %p177
    %s180 = sadd.s32 %s179, 1
    %p183 = scmp.eq.s32.totalorder %s19, 1
    %p184 = scmp.ne.s32.totalorder %s179, %s181
    %p185 = scmp.eq.s32.totalorder %s19, 0
    %p186 = por %p184, %p185
    %p187 = scmp.ne.s32.totalorder %s179, %s181
    %p188 = scmp.eq.s32.totalorder %s24, 1
    %p189 = por %p187, %p188
    %p190 = scmp.ne.s32.totalorder %s181, %s182
    %p191 = scmp.eq.s32.totalorder %s24, 0
    %p192 = por %p190, %p191
    %p193 = scmp.ne.s32.totalorder %s181, %s182
    %p194 = scmp.eq.s32.totalorder %s25, 1
    %p195 = por %p193, %p194
    %p197 = scmp.ne.s32.totalorder %s182, %s196
    %p198 = scmp.eq.s32.totalorder %s25, 0
    %p199 = por %p197, %p198
    %s201 = sadd.s32 %s200, 1
    %p204 = scmp.eq.s32.totalorder %s19, 1
    %p205 = scmp.ne.s32.totalorder %s200, %s202
    %p206 = scmp.eq.s32.totalorder %s19, 0
    %p207 = por %p205, %p206
    %p208 = scmp.ne.s32.totalorder %s200, %s202
    %p209 = scmp.eq.s32.totalorder %s24, 1
    %p210 = por %p208, %p209
    %p211 = scmp.ne.s32.totalorder %s202, %s203
    %p212 = scmp.eq.s32.totalorder %s24, 0
    %p213 = por %p211, %p212
    %p214 = scmp.ne.s32.totalorder %s202, %s203
    %p215 = scmp.eq.s32.totalorder %s25, 1
    %p216 = por %p214, %p215
    %p218 = scmp.ne.s32.totalorder %s203, %s217
    %p219 = scmp.eq.s32.totalorder %s25, 0
    %p220 = por %p218, %p219
    %s222 = sadd.s32 %s221, 1
    %p225 = scmp.eq.s32.totalorder %s19, 1
    %p226 = scmp.ne.s32.totalorder %s221, %s223
    %p227 = scmp.eq.s32.totalorder %s19, 0
    %p228 = por %p226, %p227
    %p229 = scmp.ne.s32.totalorder %s221, %s223
    %p230 = scmp.eq.s32.totalorder %s24, 1
    %p231 = por %p229, %p230
    %p232 = scmp.ne.s32.totalorder %s223, %s224
    %p233 = scmp.eq.s32.totalorder %s24, 0
    %p234 = por %p232, %p233
    %p235 = scmp.ne.s32.totalorder %s223, %s224
    %p236 = scmp.eq.s32.totalorder %s25, 1
    %p237 = por %p235, %p236
    %p239 = scmp.ne.s32.totalorder %s224, %s238
    %p240 = scmp.eq.s32.totalorder %s25, 0
    %p241 = por %p239, %p240
    %s243 = sadd.s32 %s242, 1
    %p246 = scmp.eq.s32.totalorder %s19, 1
    %p247 = scmp.ne.s32.totalorder %s242, %s244
    %p248 = scmp.eq.s32.totalorder %s19, 0
    %p249 = por %p247, %p248
    %p250 = scmp.ne.s32.totalorder %s242, %s244
    %p251 = scmp.eq.s32.totalorder %s24, 1
    %p252 = por %p250, %p251
    %p253 = scmp.ne.s32.totalorder %s244, %s245
    %p254 = scmp.eq.s32.totalorder %s24, 0
    %p255 = por %p253, %p254
    %p256 = scmp.ne.s32.totalorder %s244, %s245
    %p257 = scmp.eq.s32.totalorder %s25, 1
    %p258 = por %p256, %p257
    %p260 = scmp.ne.s32.totalorder %s245, %s259
    %p261 = scmp.eq.s32.totalorder %s25, 0
    %p262 = por %p260, %p261
    %s264 = sadd.s32 %s263, 1
    %p267 = scmp.eq.s32.totalorder %s19, 1
    %p268 = scmp.ne.s32.totalorder %s263, %s265
    %p269 = scmp.eq.s32.totalorder %s19, 0
    %p270 = por %p268, %p269
    %p271 = scmp.ne.s32.totalorder %s263, %s265
    %p272 = scmp.eq.s32.totalorder %s24, 1
    %p273 = por %p271, %p272
    %p274 = scmp.ne.s32.totalorder %s265, %s266
    %p275 = scmp.eq.s32.totalorder %s24, 0
    %p276 = por %p274, %p275
    %p277 = scmp.ne.s32.totalorder %s265, %s266
    %p278 = scmp.eq.s32.totalorder %s25, 1
    %p279 = por %p277, %p278
    %p281 = scmp.ne.s32.totalorder %s266, %s280
    %p282 = scmp.eq.s32.totalorder %s25, 0
    %p283 = por %p281, %p282
    %s285 = sadd.s32 %s284, 1
    %p288 = scmp.eq.s32.totalorder %s19, 1
    %p289 = scmp.ne.s32.totalorder %s284, %s286
    %p290 = scmp.eq.s32.totalorder %s19, 0
    %p291 = por %p289, %p290
    %p292 = scmp.ne.s32.totalorder %s284, %s286
    %p293 = scmp.eq.s32.totalorder %s24, 1
    %p294 = por %p292, %p293
    %p295 = scmp.ne.s32.totalorder %s286, %s287
    %p296 = scmp.eq.s32.totalorder %s24, 0
    %p297 = por %p295, %p296
    %p298 = scmp.ne.s32.totalorder %s286, %s287
    %p299 = scmp.eq.s32.totalorder %s25, 1
    %p300 = por %p298, %p299
    %p302 = scmp.ne.s32.totalorder %s287, %s301
    %p303 = scmp.eq.s32.totalorder %s25, 0
    %p304 = por %p302, %p303
    %s305 = ssub.s32 %s19, %s26
    %p306 = scmp.eq.s32.totalorder %s305, 0
    %s308 = sadd.s32 %s307, 1
    %s309 = scalar_select %p306, %s307, %s308
    %p312 = pneg %p306
    %p313 = scmp.eq.s32.totalorder %s19, 1
    %p314 = por %p312, %p313
    %p315 = scmp.ne.s32.totalorder %s307, %s310
    %p316 = scmp.eq.s32.totalorder %s19, 0
    %p317 = por %p315, %p316
    %p318 = scmp.ne.s32.totalorder %s307, %s310
    %p319 = scmp.eq.s32.totalorder %s24, 1
    %p320 = por %p318, %p319
    %p321 = scmp.ne.s32.totalorder %s310, %s311
    %p322 = scmp.eq.s32.totalorder %s24, 0
    %p323 = por %p321, %p322
    %p324 = scmp.ne.s32.totalorder %s310, %s311
    %p325 = scmp.eq.s32.totalorder %s25, 1
    %p326 = por %p324, %p325
    %p328 = scmp.ne.s32.totalorder %s311, %s327
    %p329 = scmp.eq.s32.totalorder %s25, 0
    %p330 = por %p328, %p329
    %p331 = scmp.le.s32.totalorder 1, %s19
    %p332 = scmp.lt.s32.totalorder %s19, 3
    %p333 = pnand %p331, %p332
    %p334 = pneg %p333
    // Predicated region
    $region9: #{basic_block_forward.1} parent=5 // pred_check
      _
    $region10: #{basic_block_forward.1} parent=5 // pred_check_branch
      %336 = sbr.rel (%p333) target = $region12
    $region11: #{basic_block_forward.1} parent=5 // pred_region
      %s337 = ssub.s32 %s19, 1
      // Predicated region
      $region13: #{basic_block_forward.1} parent=11 // pred_check
        %p338 = pneg %p66
      $region14: #{basic_block_forward.1} parent=11 // pred_check_branch
        %340 = sbr.rel (%p338) target = $region16
      $region15: #{basic_block_forward.1} parent=11 // pred_region
        _
      $region16: #{basic_block_forward.1} parent=11 // pred_fallthru
        _
      // Predicated region
      $region17: #{basic_block_forward.1} parent=11 // pred_check
        %p341 = pneg %p87
      $region18: #{basic_block_forward.1} parent=11 // pred_check_branch
        %343 = sbr.rel (%p341) target = $region20
      $region19: #{basic_block_forward.1} parent=11 // pred_region
        _
      $region20: #{basic_block_forward.1} parent=11 // pred_fallthru
        _
      // Predicated region
      $region21: #{basic_block_forward.1} parent=11 // pred_check
        %p344 = pneg %p108
      $region22: #{basic_block_forward.1} parent=11 // pred_check_branch
        %346 = sbr.rel (%p344) target = $region24
      $region23: #{basic_block_forward.1} parent=11 // pred_region
        _
      $region24: #{basic_block_forward.1} parent=11 // pred_fallthru
        _
      // Predicated region
      $region25: #{basic_block_forward.1} parent=11 // pred_check
        %p347 = pneg %p129
      $region26: #{basic_block_forward.1} parent=11 // pred_check_branch
        %349 = sbr.rel (%p347) target = $region28
      $region27: #{basic_block_forward.1} parent=11 // pred_region
        _
      $region28: #{basic_block_forward.1} parent=11 // pred_fallthru
        _
      // Predicated region
      $region29: #{basic_block_forward.1} parent=11 // pred_check
        %p350 = pneg %p150
      $region30: #{basic_block_forward.1} parent=11 // pred_check_branch
        %352 = sbr.rel (%p350) target = $region32
      $region31: #{basic_block_forward.1} parent=11 // pred_region
        _
      $region32: #{basic_block_forward.1} parent=11 // pred_fallthru
        _
      // Predicated region
      $region33: #{basic_block_forward.1} parent=11 // pred_check
        %p353 = pneg %p171
      $region34: #{basic_block_forward.1} parent=11 // pred_check_branch
        %355 = sbr.rel (%p353) target = $region36
      $region35: #{basic_block_forward.1} parent=11 // pred_region
        _
      $region36: #{basic_block_forward.1} parent=11 // pred_fallthru
        _
      // Predicated region
      $region37: #{basic_block_forward.1} parent=11 // pred_check
        %p356 = pneg %p192
      $region38: #{basic_block_forward.1} parent=11 // pred_check_branch
        %358 = sbr.rel (%p356) target = $region40
      $region39: #{basic_block_forward.1} parent=11 // pred_region
        _
      $region40: #{basic_block_forward.1} parent=11 // pred_fallthru
        _
      // Predicated region
      $region41: #{basic_block_forward.1} parent=11 // pred_check
        %p359 = pneg %p213
      $region42: #{basic_block_forward.1} parent=11 // pred_check_branch
        %361 = sbr.rel (%p359) target = $region44
      $region43: #{basic_block_forward.1} parent=11 // pred_region
        _
      $region44: #{basic_block_forward.1} parent=11 // pred_fallthru
        _
      // Predicated region
      $region45: #{basic_block_forward.1} parent=11 // pred_check
        %p362 = pneg %p234
      $region46: #{basic_block_forward.1} parent=11 // pred_check_branch
        %364 = sbr.rel (%p362) target = $region48
      $region47: #{basic_block_forward.1} parent=11 // pred_region
        _
      $region48: #{basic_block_forward.1} parent=11 // pred_fallthru
        _
      // Predicated region
      $region49: #{basic_block_forward.1} parent=11 // pred_check
        %p365 = pneg %p255
      $region50: #{basic_block_forward.1} parent=11 // pred_check_branch
        %367 = sbr.rel (%p365) target = $region52
      $region51: #{basic_block_forward.1} parent=11 // pred_region
        _
      $region52: #{basic_block_forward.1} parent=11 // pred_fallthru
        _
      // Predicated region
      $region53: #{basic_block_forward.1} parent=11 // pred_check
        %p368 = pneg %p276
      $region54: #{basic_block_forward.1} parent=11 // pred_check_branch
        %370 = sbr.rel (%p368) target = $region56
      $region55: #{basic_block_forward.1} parent=11 // pred_region
        _
      $region56: #{basic_block_forward.1} parent=11 // pred_fallthru
        _
      // Predicated region
      $region57: #{basic_block_forward.1} parent=11 // pred_check
        %p371 = pneg %p297
      $region58: #{basic_block_forward.1} parent=11 // pred_check_branch
        %373 = sbr.rel (%p371) target = $region60
      $region59: #{basic_block_forward.1} parent=11 // pred_region
        _
      $region60: #{basic_block_forward.1} parent=11 // pred_fallthru
        _
    $region12: #{basic_block_forward.1} parent=5 // pred_fallthru
      _
    %p374 = scmp.lt.s32.totalorder %s19, 2
    // Predicated region
    $region61: #{basic_block_forward.1} parent=5 // pred_check
      %p375 = pneg %p374
    $region62: #{basic_block_forward.1} parent=5 // pred_check_branch
      %377 = sbr.rel (%p375) target = $region64
    $region63: #{basic_block_forward.1} parent=5 // pred_region
      // Predicated region
      $region65: #{basic_block_forward.1} parent=63 // pred_check
        %p378 = pneg %p39
      $region66: #{basic_block_forward.1} parent=63 // pred_check_branch
        %380 = sbr.rel (%p378) target = $region68
      $region67: #{basic_block_forward.1} parent=63 // pred_region
        %p381 = scmp.lt.s32.totalorder %s19, 1
        %s382 = scalar_select %p381, %s19, 1
        %s383 = smul.addr %s382, 2
        %s384 = smul.addr %s383, 8
        %s385 = scalar_lea.vmem %s0, %s384
      $region68: #{basic_block_forward.1} parent=63 // pred_fallthru
        _
    $region64: #{basic_block_forward.1} parent=5 // pred_fallthru
      _
    %p386 = scmp.le.s32.totalorder 1, %s19
    %p387 = scmp.lt.s32.totalorder %s19, 3
    %p388 = pnand %p386, %p387
    %p389 = pneg %p388
    // Predicated region
    $region69: #{basic_block_forward.1} parent=5 // pred_check
      _
    $region70: #{basic_block_forward.1} parent=5 // pred_check_branch
      %391 = sbr.rel (%p388) target = $region72
    $region71: #{basic_block_forward.1} parent=5 // pred_region
      %s392 = ssub.s32 %s19, 1
      %p393 = scmp.lt.s32.totalorder %s24, 1
      %s394 = scalar_select %p393, %s24, 1
      %s395 = smul.addr %s394, 2
      %s396 = smul.addr %s395, 8
      %s397 = scalar_lea.vmem %s0, %s396
      %p398 = pneg %p45
      %p399 = pneg %p42
      %p400 = pneg %p66
      %p401 = pneg %p63
      %p402 = pneg %p87
      %p403 = pneg %p84
      %p404 = pneg %p108
      %p405 = pneg %p105
      %p406 = pneg %p129
      %p407 = pneg %p126
      %p408 = pneg %p150
      %p409 = pneg %p147
      %p410 = pneg %p171
      %p411 = pneg %p168
      %p412 = pneg %p192
      %p413 = pneg %p189
      %p414 = pneg %p213
      %p415 = pneg %p210
      %p416 = pneg %p234
      %p417 = pneg %p231
      %p418 = pneg %p255
      %p419 = pneg %p252
      %p420 = pneg %p276
      %p421 = pneg %p273
      %p422 = pneg %p297
      %p423 = pneg %p294
      %p424 = pneg %p323
      %p425 = pneg %p320
      %p426 = scmp.lt.s32.totalorder %s24, 1
      %s427 = scalar_select %p426, %s24, 1
      %s428 = smul.addr %s427, 4
      %s429 = smul.addr %s428, 8
      %s430 = scalar_lea.vmem %s13, %s429
      %p431 = scmp.lt.s32.totalorder %s24, 1
      %s432 = scalar_select %p431, %s24, 1
      %s433 = smul.addr %s432, 2
      %s434 = smul.addr %s433, 8
      %s435 = scalar_lea.vmem %s0, %s434
      %p436 = scmp.lt.s32.totalorder %s24, 1
      %s437 = scalar_select %p436, %s24, 1
      %s438 = smul.addr %s437, 4
      %s439 = smul.addr %s438, 8
      %s440 = scalar_lea.vmem %s13, %s439
      %442 = vst [vmem:[#allocation2] sm:$0x1] 0.0
      %443 = vst [vmem:[#allocation2 + $0x11] sm:$0x1] 0.0
      %444 = vst [vmem:[#allocation3] sm:$0x1] 0.0
      %445 = vst [vmem:[#allocation3 + $0x11] sm:$0x1] 0.0
      %v446 = vld [vmem:[%s435] sm:$0xff]
      %v447 = vld [vmem:[%s435 + $0x8] sm:$0xff]
      %448 = vst [vmem:[#allocation2 + $0x1] sm:$0xff] %v446
      %449 = vst [vmem:[#allocation2 + $0x9] sm:$0xff] %v447
      %v450 = vld [vmem:[%s2] sm:$0x1]
      %v451 = vld [vmem:[%s3] sm:$0x1]
      %v452 = vld [vmem:[#allocation2] sm:$0xff]
      %v453 = vld [vmem:[#allocation2 + $0x8] sm:$0xff]
      %v454 = vld [vmem:[#allocation2 + $0x10] sm:$0x3]
      %v455 = vpack.c.bf16 %v453, %v452
      %v456 = vpack.c.bf16 %v454, %v454
      %v457 = vld [vmem:[%s1] sm:$0xf]
      %v458 = vld [vmem:[%s1 + $0x4] sm:$0xf]
      %v459 = vld [vmem:[%s1 + $0x8] sm:$0xf]
      %v460 = vld [vmem:[%s1 + $0xc] sm:$0xf]
      %v461 = vld [vmem:[%s1 + $0x10] sm:$0xf]
      %v462 = vld [vmem:[%s1 + $0x14] sm:$0xf]
      %v463 = vld [vmem:[%s1 + $0x18] sm:$0xf]
      %v464 = vld [vmem:[%s1 + $0x1c] sm:$0xf]
      %v465 = vld [vmem:[%s1 + $0x20] sm:$0xf]
      %v466 = vld [vmem:[%s1 + $0x24] sm:$0xf]
      %v467 = vld [vmem:[%s1 + $0x28] sm:$0xf]
      %v468 = vld [vmem:[%s1 + $0x2c] sm:$0xf]
      %v469 = vld [vmem:[%s1 + $0x30] sm:$0xf]
      %v470 = vld [vmem:[%s1 + $0x34] sm:$0xf]
      %v471 = vld [vmem:[%s1 + $0x38] sm:$0xf]
      %v472 = vld [vmem:[%s1 + $0x3c] sm:$0xf]
      %s473 = scalar_lea.vmem %s1, 64
      %v474 = vld [vmem:[%s473] sm:$0xf]
      %v475 = vld [vmem:[%s473 + $0x4] sm:$0xf]
      %v476 = vld [vmem:[%s473 + $0x8] sm:$0xf]
      %v477 = vld [vmem:[%s473 + $0xc] sm:$0xf]
      %v478 = vld [vmem:[%s473 + $0x10] sm:$0xf]
      %v479 = vld [vmem:[%s473 + $0x14] sm:$0xf]
      %v480 = vld [vmem:[%s473 + $0x18] sm:$0xf]
      %v481 = vld [vmem:[%s473 + $0x1c] sm:$0xf]
      %v482 = vld [vmem:[%s473 + $0x20] sm:$0xf]
      %v483 = vld [vmem:[%s473 + $0x24] sm:$0xf]
      %v484 = vld [vmem:[%s473 + $0x28] sm:$0xf]
      %v485 = vld [vmem:[%s473 + $0x2c] sm:$0xf]
      %v486 = vld [vmem:[%s473 + $0x30] sm:$0xf]
      %v487 = vld [vmem:[%s473 + $0x34] sm:$0xf]
      %v488 = vld [vmem:[%s473 + $0x38] sm:$0xf]
      %v489 = vld [vmem:[%s473 + $0x3c] sm:$0xf]
      %vm490 = vsmask.f32 7424
      %v492 = vshrl.u32 %v455, 16
      %v494 = vshll.u32 %v455, 16
      %v496 = vrot.slane %v494, 1
      %v497 = vor.u32 %v492, %v496
      %v499 = vshll.u32 %v456, 16
      %v501 = vrot.slane %v499, 1
      %v502 = vsel %vm490, %v497, %v501
      %v520 = vunpack.c.l.b16 %v474
      %v521 = vunpack.c.l.b16 %v475
      %v522 = vunpack.c.l.b16 %v476
      %v523 = vunpack.c.l.b16 %v477
      %v524 = vunpack.c.l.b16 %v478
      %v525 = vunpack.c.l.b16 %v479
      %v526 = vunpack.c.l.b16 %v480
      %v527 = vunpack.c.l.b16 %v481
      %v528 = vunpack.c.l.b16 %v482
      %v529 = vunpack.c.l.b16 %v483
      %v530 = vunpack.c.l.b16 %v484
      %v531 = vunpack.c.l.b16 %v485
      %v532 = vunpack.c.l.b16 %v486
      %v533 = vunpack.c.l.b16 %v487
      %v534 = vunpack.c.l.b16 %v488
      %v535 = vunpack.c.l.b16 %v489
      %v536 = vpack.c.b16 %v521, %v520
      %v537 = vpack.c.b16 %v523, %v522
      %v538 = vpack.c.b16 %v525, %v524
      %v539 = vpack.c.b16 %v527, %v526
      %v540 = vpack.c.b16 %v529, %v528
      %v541 = vpack.c.b16 %v531, %v530
      %v542 = vpack.c.b16 %v533, %v532
      %v543 = vpack.c.b16 %v535, %v534
      %552 = vmatprep.subr.bf16.mxu0 0
      %553 = vmatpush1.bf16.msra.mxu0 %v536
      %554 = vmatprep.subr.bf16.mxu0 0
      %555 = vmatpush1.bf16.msra.mxu0 %v537
      %556 = vmatprep.subr.bf16.mxu0 0
      %557 = vmatpush1.bf16.msra.mxu0 %v538
      %558 = vmatprep.subr.bf16.mxu0 0
      %559 = vmatpush1.bf16.msra.mxu0 %v539
      %560 = vmatprep.subr.bf16.mxu0 0
      %561 = vmatpush1.bf16.msra.mxu0 %v540
      %562 = vmatprep.subr.bf16.mxu0 0
      %563 = vmatpush1.bf16.msra.mxu0 %v541
      %564 = vmatprep.subr.bf16.mxu0 0
      %565 = vmatpush1.bf16.msra.mxu0 %v542
      %566 = vmatprep.subr.bf16.mxu0 0
      %567 = vmatpush1.bf16.msra.mxu0 %v543
      %568 = vmatprep.subr.bf16.mxu0 0
      %569 = vmatpush1.bf16.msra.mxu0 0
      %570 = vmatprep.subr.bf16.mxu0 0
      %571 = vmatpush1.bf16.msra.mxu0 0
      %572 = vmatprep.subr.bf16.mxu0 0
      %573 = vmatpush1.bf16.msra.mxu0 0
      %574 = vmatprep.subr.bf16.mxu0 0
      %575 = vmatpush1.bf16.msra.mxu0 0
      %576 = vmatprep.subr.bf16.mxu0 0
      %577 = vmatpush1.bf16.msra.mxu0 0
      %578 = vmatprep.subr.bf16.mxu0 0
      %579 = vmatpush1.bf16.msra.mxu0 0
      %580 = vmatprep.subr.bf16.mxu0 0
      %581 = vmatpush1.bf16.msra.mxu0 0
      %582 = vmatprep.subr.bf16.mxu0 0
      %583 = vmatpush1.bf16.msra.mxu0 0
      %584 = vmatprep.mubr.bf16.mxu0 0
      %585 = vmatmul.mubr.bf16.gmra.mrb[0].mxu0 %v502
      %v586 = vpop.f32.mrb[0].mxu0
      %v587 = vadd.f32 0.0, %v586
      %v588 = vpop.f32.mrb[0].mxu0
      %v589 = vpop.f32.mrb[0].mxu0
      %v590 = vadd.f32 0.0, %v589
      %v591 = vpop.f32.mrb[0].mxu0
      %592 = vdwg.mxu0
      %v609 = vunpack.c.l.b16 %v457
      %v610 = vunpack.c.l.b16 %v458
      %v611 = vunpack.c.l.b16 %v459
      %v612 = vunpack.c.l.b16 %v460
      %v613 = vunpack.c.l.b16 %v461
      %v614 = vunpack.c.l.b16 %v462
      %v615 = vunpack.c.l.b16 %v463
      %v616 = vunpack.c.l.b16 %v464
      %v617 = vunpack.c.l.b16 %v465
      %v618 = vunpack.c.l.b16 %v466
      %v619 = vunpack.c.l.b16 %v467
      %v620 = vunpack.c.l.b16 %v468
      %v621 = vunpack.c.l.b16 %v469
      %v622 = vunpack.c.l.b16 %v470
      %v623 = vunpack.c.l.b16 %v471
      %v624 = vunpack.c.l.b16 %v472
      %v625 = vpack.c.b16 %v610, %v609
      %v626 = vpack.c.b16 %v612, %v611
      %v627 = vpack.c.b16 %v614, %v613
      %v628 = vpack.c.b16 %v616, %v615
      %v629 = vpack.c.b16 %v618, %v617
      %v630 = vpack.c.b16 %v620, %v619
      %v631 = vpack.c.b16 %v622, %v621
      %v632 = vpack.c.b16 %v624, %v623
      %641 = vmatprep.subr.bf16.mxu0 0
      %642 = vmatpush1.bf16.msra.mxu0 %v625
      %643 = vmatprep.subr.bf16.mxu0 0
      %644 = vmatpush1.bf16.msra.mxu0 %v626
      %645 = vmatprep.subr.bf16.mxu0 0
      %646 = vmatpush1.bf16.msra.mxu0 %v627
      %647 = vmatprep.subr.bf16.mxu0 0
      %648 = vmatpush1.bf16.msra.mxu0 %v628
      %649 = vmatprep.subr.bf16.mxu0 0
      %650 = vmatpush1.bf16.msra.mxu0 %v629
      %651 = vmatprep.subr.bf16.mxu0 0
      %652 = vmatpush1.bf16.msra.mxu0 %v630
      %653 = vmatprep.subr.bf16.mxu0 0
      %654 = vmatpush1.bf16.msra.mxu0 %v631
      %655 = vmatprep.subr.bf16.mxu0 0
      %656 = vmatpush1.bf16.msra.mxu0 %v632
      %657 = vmatprep.subr.bf16.mxu0 0
      %658 = vmatpush1.bf16.msra.mxu0 0
      %659 = vmatprep.subr.bf16.mxu0 0
      %660 = vmatpush1.bf16.msra.mxu0 0
      %661 = vmatprep.subr.bf16.mxu0 0
      %662 = vmatpush1.bf16.msra.mxu0 0
      %663 = vmatprep.subr.bf16.mxu0 0
      %664 = vmatpush1.bf16.msra.mxu0 0
      %665 = vmatprep.subr.bf16.mxu0 0
      %666 = vmatpush1.bf16.msra.mxu0 0
      %667 = vmatprep.subr.bf16.mxu0 0
      %668 = vmatpush1.bf16.msra.mxu0 0
      %669 = vmatprep.subr.bf16.mxu0 0
      %670 = vmatpush1.bf16.msra.mxu0 0
      %671 = vmatprep.subr.bf16.mxu0 0
      %672 = vmatpush1.bf16.msra.mxu0 0
      %673 = vmatprep.mubr.bf16.mxu0 0
      %674 = vmatmul.mubr.bf16.gmra.mrb[0].mxu0 %v455
      %v675 = vpop.f32.mrb[0].mxu0
      %v676 = vadd.f32 %v587, %v675
      %v677 = vpop.f32.mrb[0].mxu0
      %v678 = vpop.f32.mrb[0].mxu0
      %v679 = vadd.f32 %v590, %v678
      %v680 = vpop.f32.mrb[0].mxu0
      %681 = vdwg.mxu0
      %s682 = scalar_lea.vmem %s1, 128
      %v683 = vld [vmem:[%s682] sm:$0xf]
      %v684 = vld [vmem:[%s682 + $0x4] sm:$0xf]
      %v685 = vld [vmem:[%s682 + $0x8] sm:$0xf]
      %v686 = vld [vmem:[%s682 + $0xc] sm:$0xf]
      %v687 = vld [vmem:[%s682 + $0x10] sm:$0xf]
      %v688 = vld [vmem:[%s682 + $0x14] sm:$0xf]
      %v689 = vld [vmem:[%s682 + $0x18] sm:$0xf]
      %v690 = vld [vmem:[%s682 + $0x1c] sm:$0xf]
      %v691 = vld [vmem:[%s682 + $0x20] sm:$0xf]
      %v692 = vld [vmem:[%s682 + $0x24] sm:$0xf]
      %v693 = vld [vmem:[%s682 + $0x28] sm:$0xf]
      %v694 = vld [vmem:[%s682 + $0x2c] sm:$0xf]
      %v695 = vld [vmem:[%s682 + $0x30] sm:$0xf]
      %v696 = vld [vmem:[%s682 + $0x34] sm:$0xf]
      %v697 = vld [vmem:[%s682 + $0x38] sm:$0xf]
      %v698 = vld [vmem:[%s682 + $0x3c] sm:$0xf]
      %vm701 = vcmask 1046528
      %v702 = vrot.slane %v455, 1
      %v703 = vrot.slane %v456, 1
      %v704 = vsel %vm701, %v702, %v703
      %v722 = vunpack.c.l.b16 %v683
      %v723 = vunpack.c.l.b16 %v684
      %v724 = vunpack.c.l.b16 %v685
      %v725 = vunpack.c.l.b16 %v686
      %v726 = vunpack.c.l.b16 %v687
      %v727 = vunpack.c.l.b16 %v688
      %v728 = vunpack.c.l.b16 %v689
      %v729 = vunpack.c.l.b16 %v690
      %v730 = vunpack.c.l.b16 %v691
      %v731 = vunpack.c.l.b16 %v692
      %v732 = vunpack.c.l.b16 %v693
      %v733 = vunpack.c.l.b16 %v694
      %v734 = vunpack.c.l.b16 %v695
      %v735 = vunpack.c.l.b16 %v696
      %v736 = vunpack.c.l.b16 %v697
      %v737 = vunpack.c.l.b16 %v698
      %v738 = vpack.c.b16 %v723, %v722
      %v739 = vpack.c.b16 %v725, %v724
      %v740 = vpack.c.b16 %v727, %v726
      %v741 = vpack.c.b16 %v729, %v728
      %v742 = vpack.c.b16 %v731, %v730
      %v743 = vpack.c.b16 %v733, %v732
      %v744 = vpack.c.b16 %v735, %v734
      %v745 = vpack.c.b16 %v737, %v736
      %754 = vmatprep.subr.bf16.mxu0 0
      %755 = vmatpush1.bf16.msra.mxu0 %v738
      %756 = vmatprep.subr.bf16.mxu0 0
      %757 = vmatpush1.bf16.msra.mxu0 %v739
      %758 = vmatprep.subr.bf16.mxu0 0
      %759 = vmatpush1.bf16.msra.mxu0 %v740
      %760 = vmatprep.subr.bf16.mxu0 0
      %761 = vmatpush1.bf16.msra.mxu0 %v741
      %762 = vmatprep.subr.bf16.mxu0 0
      %763 = vmatpush1.bf16.msra.mxu0 %v742
      %764 = vmatprep.subr.bf16.mxu0 0
      %765 = vmatpush1.bf16.msra.mxu0 %v743
      %766 = vmatprep.subr.bf16.mxu0 0
      %767 = vmatpush1.bf16.msra.mxu0 %v744
      %768 = vmatprep.subr.bf16.mxu0 0
      %769 = vmatpush1.bf16.msra.mxu0 %v745
      %770 = vmatprep.subr.bf16.mxu0 0
      %771 = vmatpush1.bf16.msra.mxu0 0
      %772 = vmatprep.subr.bf16.mxu0 0
      %773 = vmatpush1.bf16.msra.mxu0 0
      %774 = vmatprep.subr.bf16.mxu0 0
      %775 = vmatpush1.bf16.msra.mxu0 0
      %776 = vmatprep.subr.bf16.mxu0 0
      %777 = vmatpush1.bf16.msra.mxu0 0
      %778 = vmatprep.subr.bf16.mxu0 0
      %779 = vmatpush1.bf16.msra.mxu0 0
      %780 = vmatprep.subr.bf16.mxu0 0
      %781 = vmatpush1.bf16.msra.mxu0 0
      %782 = vmatprep.subr.bf16.mxu0 0
      %783 = vmatpush1.bf16.msra.mxu0 0
      %784 = vmatprep.subr.bf16.mxu0 0
      %785 = vmatpush1.bf16.msra.mxu0 0
      %786 = vmatprep.mubr.bf16.mxu0 0
      %787 = vmatmul.mubr.bf16.gmra.mrb[0].mxu0 %v704
      %v788 = vpop.f32.mrb[0].mxu0
      %v789 = vadd.f32 0.0, %v788
      %v790 = vpop.f32.mrb[0].mxu0
      %v791 = vpop.f32.mrb[0].mxu0
      %v792 = vadd.f32 0.0, %v791
      %v793 = vpop.f32.mrb[0].mxu0
      %794 = vdwg.mxu0
      %v795 = vadd.f32 %v676, %v789
      %v796 = vadd.f32 %v679, %v792
      %v798 = vlaneseq
      %v799 = vshrl.u32 %v798, 7
      %v800 = vsub.s32 0, %v799
      %v801 = vrot.slane %v450, %v800
      %v803 = vmul.f32 %v795, %v801
      %v804 = vmul.f32 %v796, %v801
      %v806 = vlaneseq
      %v807 = vshrl.u32 %v806, 7
      %v808 = vsub.s32 0, %v807
      %v809 = vrot.slane %v451, %v808
      %v811 = vadd.f32 %v803, %v809
      %v812 = vadd.f32 %v804, %v809
      %v813 = vmax.f32 %v811, 0.0
      %v814 = vmax.f32 %v812, 0.0
      %815 = vst [vmem:[#allocation3 + $0x1] sm:$0xff] %v813
      %816 = vst [vmem:[#allocation3 + $0x9] sm:$0xff] %v814
      %v817 = vld [vmem:[%s5] sm:$0x3]
      %v818 = vld [vmem:[%s6] sm:$0x3]
      %v819 = vld [vmem:[#allocation3] sm:$0xff]
      %v820 = vld [vmem:[#allocation3 + $0x8] sm:$0xff]
      %v821 = vld [vmem:[#allocation3 + $0x10] sm:$0x3]
      %v822 = vpack.c.bf16 %v820, %v819
      %v823 = vpack.c.bf16 %v821, %v821
      %v824 = vld [vmem:[%s4] sm:$0xff]
      %v825 = vld [vmem:[%s4 + $0x8] sm:$0xff]
      %v826 = vld [vmem:[%s4 + $0x10] sm:$0xff]
      %v827 = vld [vmem:[%s4 + $0x18] sm:$0xff]
      %v828 = vld [vmem:[%s4 + $0x20] sm:$0xff]
      %v829 = vld [vmem:[%s4 + $0x28] sm:$0xff]
      %v830 = vld [vmem:[%s4 + $0x30] sm:$0xff]
      %v831 = vld [vmem:[%s4 + $0x38] sm:$0xff]
      %v832 = vld [vmem:[%s4 + $0x40] sm:$0xff]
      %v833 = vld [vmem:[%s4 + $0x48] sm:$0xff]
      %v834 = vld [vmem:[%s4 + $0x50] sm:$0xff]
      %v835 = vld [vmem:[%s4 + $0x58] sm:$0xff]
      %v836 = vld [vmem:[%s4 + $0x60] sm:$0xff]
      %v837 = vld [vmem:[%s4 + $0x68] sm:$0xff]
      %v838 = vld [vmem:[%s4 + $0x70] sm:$0xff]
      %v839 = vld [vmem:[%s4 + $0x78] sm:$0xff]
      %s840 = scalar_lea.vmem %s4, 128
      %v841 = vld [vmem:[%s840] sm:$0xff]
      %v842 = vld [vmem:[%s840 + $0x8] sm:$0xff]
      %v843 = vld [vmem:[%s840 + $0x10] sm:$0xff]
      %v844 = vld [vmem:[%s840 + $0x18] sm:$0xff]
      %v845 = vld [vmem:[%s840 + $0x20] sm:$0xff]
      %v846 = vld [vmem:[%s840 + $0x28] sm:$0xff]
      %v847 = vld [vmem:[%s840 + $0x30] sm:$0xff]
      %v848 = vld [vmem:[%s840 + $0x38] sm:$0xff]
      %v849 = vld [vmem:[%s840 + $0x40] sm:$0xff]
      %v850 = vld [vmem:[%s840 + $0x48] sm:$0xff]
      %v851 = vld [vmem:[%s840 + $0x50] sm:$0xff]
      %v852 = vld [vmem:[%s840 + $0x58] sm:$0xff]
      %v853 = vld [vmem:[%s840 + $0x60] sm:$0xff]
      %v854 = vld [vmem:[%s840 + $0x68] sm:$0xff]
      %v855 = vld [vmem:[%s840 + $0x70] sm:$0xff]
      %v856 = vld [vmem:[%s840 + $0x78] sm:$0xff]
      %v858 = vshrl.u32 %v822, 16
      %v860 = vshll.u32 %v822, 16
      %v862 = vrot.slane %v860, 1
      %v863 = vor.u32 %v858, %v862
      %v865 = vshll.u32 %v823, 16
      %v867 = vrot.slane %v865, 1
      %v868 = vsel %vm490, %v863, %v867
      %v886 = vunpack.c.l.b16 %v841
      %v887 = vunpack.c.h.b16 %v841
      %v888 = vunpack.c.l.b16 %v842
      %v889 = vunpack.c.h.b16 %v842
      %v890 = vunpack.c.l.b16 %v843
      %v891 = vunpack.c.h.b16 %v843
      %v892 = vunpack.c.l.b16 %v844
      %v893 = vunpack.c.h.b16 %v844
      %v894 = vunpack.c.l.b16 %v845
      %v895 = vunpack.c.h.b16 %v845
      %v896 = vunpack.c.l.b16 %v846
      %v897 = vunpack.c.h.b16 %v846
      %v898 = vunpack.c.l.b16 %v847
      %v899 = vunpack.c.h.b16 %v847
      %v900 = vunpack.c.l.b16 %v848
      %v901 = vunpack.c.h.b16 %v848
      %v902 = vunpack.c.l.b16 %v849
      %v903 = vunpack.c.h.b16 %v849
      %v904 = vunpack.c.l.b16 %v850
      %v905 = vunpack.c.h.b16 %v850
      %v906 = vunpack.c.l.b16 %v851
      %v907 = vunpack.c.h.b16 %v851
      %v908 = vunpack.c.l.b16 %v852
      %v909 = vunpack.c.h.b16 %v852
      %v910 = vunpack.c.l.b16 %v853
      %v911 = vunpack.c.h.b16 %v853
      %v912 = vunpack.c.l.b16 %v854
      %v913 = vunpack.c.h.b16 %v854
      %v914 = vunpack.c.l.b16 %v855
      %v915 = vunpack.c.h.b16 %v855
      %v916 = vunpack.c.l.b16 %v856
      %v917 = vunpack.c.h.b16 %v856
      %v918 = vpack.c.b16 %v888, %v886
      %v919 = vpack.c.b16 %v889, %v887
      %v920 = vpack.c.b16 %v892, %v890
      %v921 = vpack.c.b16 %v893, %v891
      %v922 = vpack.c.b16 %v896, %v894
      %v923 = vpack.c.b16 %v897, %v895
      %v924 = vpack.c.b16 %v900, %v898
      %v925 = vpack.c.b16 %v901, %v899
      %v926 = vpack.c.b16 %v904, %v902
      %v927 = vpack.c.b16 %v905, %v903
      %v928 = vpack.c.b16 %v908, %v906
      %v929 = vpack.c.b16 %v909, %v907
      %v930 = vpack.c.b16 %v912, %v910
      %v931 = vpack.c.b16 %v913, %v911
      %v932 = vpack.c.b16 %v916, %v914
      %v933 = vpack.c.b16 %v917, %v915
      %950 = vmatprep.subr.bf16.mxu0 %v919
      %951 = vmatpush1.bf16.msra.mxu0 %v918
      %952 = vmatprep.subr.bf16.mxu0 %v921
      %953 = vmatpush1.bf16.msra.mxu0 %v920
      %954 = vmatprep.subr.bf16.mxu0 %v923
      %955 = vmatpush1.bf16.msra.mxu0 %v922
      %956 = vmatprep.subr.bf16.mxu0 %v925
      %957 = vmatpush1.bf16.msra.mxu0 %v924
      %958 = vmatprep.subr.bf16.mxu0 %v927
      %959 = vmatpush1.bf16.msra.mxu0 %v926
      %960 = vmatprep.subr.bf16.mxu0 %v929
      %961 = vmatpush1.bf16.msra.mxu0 %v928
      %962 = vmatprep.subr.bf16.mxu0 %v931
      %963 = vmatpush1.bf16.msra.mxu0 %v930
      %964 = vmatprep.subr.bf16.mxu0 %v933
      %965 = vmatpush1.bf16.msra.mxu0 %v932
      %966 = vmatprep.subr.bf16.mxu0 0
      %967 = vmatpush1.bf16.msra.mxu0 0
      %968 = vmatprep.subr.bf16.mxu0 0
      %969 = vmatpush1.bf16.msra.mxu0 0
      %970 = vmatprep.subr.bf16.mxu0 0
      %971 = vmatpush1.bf16.msra.mxu0 0
      %972 = vmatprep.subr.bf16.mxu0 0
      %973 = vmatpush1.bf16.msra.mxu0 0
      %974 = vmatprep.subr.bf16.mxu0 0
      %975 = vmatpush1.bf16.msra.mxu0 0
      %976 = vmatprep.subr.bf16.mxu0 0
      %977 = vmatpush1.bf16.msra.mxu0 0
      %978 = vmatprep.subr.bf16.mxu0 0
      %979 = vmatpush1.bf16.msra.mxu0 0
      %980 = vmatprep.subr.bf16.mxu0 0
      %981 = vmatpush1.bf16.msra.mxu0 0
      %982 = vmatprep.mubr.bf16.mxu0 0
      %983 = vmatmul.mubr.bf16.gmra.mrb[0].mxu0 %v868
      %v984 = vpop.f32.mrb[0].mxu0
      %v985 = vadd.f32 0.0, %v984
      %v986 = vpop.f32.mrb[0].mxu0
      %v987 = vadd.f32 0.0, %v986
      %v988 = vpop.f32.mrb[0].mxu0
      %v989 = vadd.f32 0.0, %v988
      %v990 = vpop.f32.mrb[0].mxu0
      %v991 = vadd.f32 0.0, %v990
      %992 = vdwg.mxu0
      %v1009 = vunpack.c.l.b16 %v824
      %v1010 = vunpack.c.h.b16 %v824
      %v1011 = vunpack.c.l.b16 %v825
      %v1012 = vunpack.c.h.b16 %v825
      %v1013 = vunpack.c.l.b16 %v826
      %v1014 = vunpack.c.h.b16 %v826
      %v1015 = vunpack.c.l.b16 %v827
      %v1016 = vunpack.c.h.b16 %v827
      %v1017 = vunpack.c.l.b16 %v828
      %v1018 = vunpack.c.h.b16 %v828
      %v1019 = vunpack.c.l.b16 %v829
      %v1020 = vunpack.c.h.b16 %v829
      %v1021 = vunpack.c.l.b16 %v830
      %v1022 = vunpack.c.h.b16 %v830
      %v1023 = vunpack.c.l.b16 %v831
      %v1024 = vunpack.c.h.b16 %v831
      %v1025 = vunpack.c.l.b16 %v832
      %v1026 = vunpack.c.h.b16 %v832
      %v1027 = vunpack.c.l.b16 %v833
      %v1028 = vunpack.c.h.b16 %v833
      %v1029 = vunpack.c.l.b16 %v834
      %v1030 = vunpack.c.h.b16 %v834
      %v1031 = vunpack.c.l.b16 %v835
      %v1032 = vunpack.c.h.b16 %v835
      %v1033 = vunpack.c.l.b16 %v836
      %v1034 = vunpack.c.h.b16 %v836
      %v1035 = vunpack.c.l.b16 %v837
      %v1036 = vunpack.c.h.b16 %v837
      %v1037 = vunpack.c.l.b16 %v838
      %v1038 = vunpack.c.h.b16 %v838
      %v1039 = vunpack.c.l.b16 %v839
      %v1040 = vunpack.c.h.b16 %v839
      %v1041 = vpack.c.b16 %v1011, %v1009
      %v1042 = vpack.c.b16 %v1012, %v1010
      %v1043 = vpack.c.b16 %v1015, %v1013
      %v1044 = vpack.c.b16 %v1016, %v1014
      %v1045 = vpack.c.b16 %v1019, %v1017
      %v1046 = vpack.c.b16 %v1020, %v1018
      %v1047 = vpack.c.b16 %v1023, %v1021
      %v1048 = vpack.c.b16 %v1024, %v1022
      %v1049 = vpack.c.b16 %v1027, %v1025
      %v1050 = vpack.c.b16 %v1028, %v1026
      %v1051 = vpack.c.b16 %v1031, %v1029
      %v1052 = vpack.c.b16 %v1032, %v1030
      %v1053 = vpack.c.b16 %v1035, %v1033
      %v1054 = vpack.c.b16 %v1036, %v1034
      %v1055 = vpack.c.b16 %v1039, %v1037
      %v1056 = vpack.c.b16 %v1040, %v1038
      %1073 = vmatprep.subr.bf16.mxu0 %v1042
      %1074 = vmatpush1.bf16.msra.mxu0 %v1041
      %1075 = vmatprep.subr.bf16.mxu0 %v1044
      %1076 = vmatpush1.bf16.msra.mxu0 %v1043
      %1077 = vmatprep.subr.bf16.mxu0 %v1046
      %1078 = vmatpush1.bf16.msra.mxu0 %v1045
      %1079 = vmatprep.subr.bf16.mxu0 %v1048
      %1080 = vmatpush1.bf16.msra.mxu0 %v1047
      %1081 = vmatprep.subr.bf16.mxu0 %v1050
      %1082 = vmatpush1.bf16.msra.mxu0 %v1049
      %1083 = vmatprep.subr.bf16.mxu0 %v1052
      %1084 = vmatpush1.bf16.msra.mxu0 %v1051
      %1085 = vmatprep.subr.bf16.mxu0 %v1054
      %1086 = vmatpush1.bf16.msra.mxu0 %v1053
      %1087 = vmatprep.subr.bf16.mxu0 %v1056
      %1088 = vmatpush1.bf16.msra.mxu0 %v1055
      %1089 = vmatprep.subr.bf16.mxu0 0
      %1090 = vmatpush1.bf16.msra.mxu0 0
      %1091 = vmatprep.subr.bf16.mxu0 0
      %1092 = vmatpush1.bf16.msra.mxu0 0
      %1093 = vmatprep.subr.bf16.mxu0 0
      %1094 = vmatpush1.bf16.msra.mxu0 0
      %1095 = vmatprep.subr.bf16.mxu0 0
      %1096 = vmatpush1.bf16.msra.mxu0 0
      %1097 = vmatprep.subr.bf16.mxu0 0
      %1098 = vmatpush1.bf16.msra.mxu0 0
      %1099 = vmatprep.subr.bf16.mxu0 0
      %1100 = vmatpush1.bf16.msra.mxu0 0
      %1101 = vmatprep.subr.bf16.mxu0 0
      %1102 = vmatpush1.bf16.msra.mxu0 0
      %1103 = vmatprep.subr.bf16.mxu0 0
      %1104 = vmatpush1.bf16.msra.mxu0 0
      %1105 = vmatprep.mubr.bf16.mxu0 0
      %1106 = vmatmul.mubr.bf16.gmra.mrb[0].mxu0 %v822
      %v1107 = vpop.f32.mrb[0].mxu0
      %v1108 = vadd.f32 %v985, %v1107
      %v1109 = vpop.f32.mrb[0].mxu0
      %v1110 = vadd.f32 %v987, %v1109
      %v1111 = vpop.f32.mrb[0].mxu0
      %v1112 = vadd.f32 %v989, %v1111
      %v1113 = vpop.f32.mrb[0].mxu0
      %v1114 = vadd.f32 %v991, %v1113
      %1115 = vdwg.mxu0
      %s1116 = scalar_lea.vmem %s4, 256
      %v1117 = vld [vmem:[%s1116] sm:$0xff]
      %v1118 = vld [vmem:[%s1116 + $0x8] sm:$0xff]
      %v1119 = vld [vmem:[%s1116 + $0x10] sm:$0xff]
      %v1120 = vld [vmem:[%s1116 + $0x18] sm:$0xff]
      %v1121 = vld [vmem:[%s1116 + $0x20] sm:$0xff]
      %v1122 = vld [vmem:[%s1116 + $0x28] sm:$0xff]
      %v1123 = vld [vmem:[%s1116 + $0x30] sm:$0xff]
      %v1124 = vld [vmem:[%s1116 + $0x38] sm:$0xff]
      %v1125 = vld [vmem:[%s1116 + $0x40] sm:$0xff]
      %v1126 = vld [vmem:[%s1116 + $0x48] sm:$0xff]
      %v1127 = vld [vmem:[%s1116 + $0x50] sm:$0xff]
      %v1128 = vld [vmem:[%s1116 + $0x58] sm:$0xff]
      %v1129 = vld [vmem:[%s1116 + $0x60] sm:$0xff]
      %v1130 = vld [vmem:[%s1116 + $0x68] sm:$0xff]
      %v1131 = vld [vmem:[%s1116 + $0x70] sm:$0xff]
      %v1132 = vld [vmem:[%s1116 + $0x78] sm:$0xff]
      %v1135 = vrot.slane %v822, 1
      %v1136 = vrot.slane %v823, 1
      %v1137 = vsel %vm701, %v1135, %v1136
      %v1155 = vunpack.c.l.b16 %v1117
      %v1156 = vunpack.c.h.b16 %v1117
      %v1157 = vunpack.c.l.b16 %v1118
      %v1158 = vunpack.c.h.b16 %v1118
      %v1159 = vunpack.c.l.b16 %v1119
      %v1160 = vunpack.c.h.b16 %v1119
      %v1161 = vunpack.c.l.b16 %v1120
      %v1162 = vunpack.c.h.b16 %v1120
      %v1163 = vunpack.c.l.b16 %v1121
      %v1164 = vunpack.c.h.b16 %v1121
      %v1165 = vunpack.c.l.b16 %v1122
      %v1166 = vunpack.c.h.b16 %v1122
      %v1167 = vunpack.c.l.b16 %v1123
      %v1168 = vunpack.c.h.b16 %v1123
      %v1169 = vunpack.c.l.b16 %v1124
      %v1170 = vunpack.c.h.b16 %v1124
      %v1171 = vunpack.c.l.b16 %v1125
      %v1172 = vunpack.c.h.b16 %v1125
      %v1173 = vunpack.c.l.b16 %v1126
      %v1174 = vunpack.c.h.b16 %v1126
      %v1175 = vunpack.c.l.b16 %v1127
      %v1176 = vunpack.c.h.b16 %v1127
      %v1177 = vunpack.c.l.b16 %v1128
      %v1178 = vunpack.c.h.b16 %v1128
      %v1179 = vunpack.c.l.b16 %v1129
      %v1180 = vunpack.c.h.b16 %v1129
      %v1181 = vunpack.c.l.b16 %v1130
      %v1182 = vunpack.c.h.b16 %v1130
      %v1183 = vunpack.c.l.b16 %v1131
      %v1184 = vunpack.c.h.b16 %v1131
      %v1185 = vunpack.c.l.b16 %v1132
      %v1186 = vunpack.c.h.b16 %v1132
      %v1187 = vpack.c.b16 %v1157, %v1155
      %v1188 = vpack.c.b16 %v1158, %v1156
      %v1189 = vpack.c.b16 %v1161, %v1159
      %v1190 = vpack.c.b16 %v1162, %v1160
      %v1191 = vpack.c.b16 %v1165, %v1163
      %v1192 = vpack.c.b16 %v1166, %v1164
      %v1193 = vpack.c.b16 %v1169, %v1167
      %v1194 = vpack.c.b16 %v1170, %v1168
      %v1195 = vpack.c.b16 %v1173, %v1171
      %v1196 = vpack.c.b16 %v1174, %v1172
      %v1197 = vpack.c.b16 %v1177, %v1175
      %v1198 = vpack.c.b16 %v1178, %v1176
      %v1199 = vpack.c.b16 %v1181, %v1179
      %v1200 = vpack.c.b16 %v1182, %v1180
      %v1201 = vpack.c.b16 %v1185, %v1183
      %v1202 = vpack.c.b16 %v1186, %v1184
      %1219 = vmatprep.subr.bf16.mxu0 %v1188
      %1220 = vmatpush1.bf16.msra.mxu0 %v1187
      %1221 = vmatprep.subr.bf16.mxu0 %v1190
      %1222 = vmatpush1.bf16.msra.mxu0 %v1189
      %1223 = vmatprep.subr.bf16.mxu0 %v1192
      %1224 = vmatpush1.bf16.msra.mxu0 %v1191
      %1225 = vmatprep.subr.bf16.mxu0 %v1194
      %1226 = vmatpush1.bf16.msra.mxu0 %v1193
      %1227 = vmatprep.subr.bf16.mxu0 %v1196
      %1228 = vmatpush1.bf16.msra.mxu0 %v1195
      %1229 = vmatprep.subr.bf16.mxu0 %v1198
      %1230 = vmatpush1.bf16.msra.mxu0 %v1197
      %1231 = vmatprep.subr.bf16.mxu0 %v1200
      %1232 = vmatpush1.bf16.msra.mxu0 %v1199
      %1233 = vmatprep.subr.bf16.mxu0 %v1202
      %1234 = vmatpush1.bf16.msra.mxu0 %v1201
      %1235 = vmatprep.subr.bf16.mxu0 0
      %1236 = vmatpush1.bf16.msra.mxu0 0
      %1237 = vmatprep.subr.bf16.mxu0 0
      %1238 = vmatpush1.bf16.msra.mxu0 0
      %1239 = vmatprep.subr.bf16.mxu0 0
      %1240 = vmatpush1.bf16.msra.mxu0 0
      %1241 = vmatprep.subr.bf16.mxu0 0
      %1242 = vmatpush1.bf16.msra.mxu0 0
      %1243 = vmatprep.subr.bf16.mxu0 0
      %1244 = vmatpush1.bf16.msra.mxu0 0
      %1245 = vmatprep.subr.bf16.mxu0 0
      %1246 = vmatpush1.bf16.msra.mxu0 0
      %1247 = vmatprep.subr.bf16.mxu0 0
      %1248 = vmatpush1.bf16.msra.mxu0 0
      %1249 = vmatprep.subr.bf16.mxu0 0
      %1250 = vmatpush1.bf16.msra.mxu0 0
      %1251 = vmatprep.mubr.bf16.mxu0 0
      %1252 = vmatmul.mubr.bf16.gmra.mrb[0].mxu0 %v1137
      %v1253 = vpop.f32.mrb[0].mxu0
      %v1254 = vadd.f32 0.0, %v1253
      %v1255 = vpop.f32.mrb[0].mxu0
      %v1256 = vadd.f32 0.0, %v1255
      %v1257 = vpop.f32.mrb[0].mxu0
      %v1258 = vadd.f32 0.0, %v1257
      %v1259 = vpop.f32.mrb[0].mxu0
      %v1260 = vadd.f32 0.0, %v1259
      %1261 = vdwg.mxu0
      %v1262 = vadd.f32 %v1108, %v1254
      %v1263 = vadd.f32 %v1110, %v1256
      %v1264 = vadd.f32 %v1112, %v1258
      %v1265 = vadd.f32 %v1114, %v1260
      %v1267 = vlaneseq
      %v1268 = vshrl.u32 %v1267, 7
      %v1269 = vsub.s32 0, %v1268
      %v1270 = vrot.slane %v817, %v1269
      %v1271 = vlaneseq
      %v1272 = vshrl.u32 %v1271, 7
      %v1273 = vsub.s32 1, %v1272
      %v1274 = vrot.slane %v817, %v1273
      %v1277 = vmul.f32 %v1262, %v1270
      %v1278 = vmul.f32 %v1263, %v1274
      %v1279 = vmul.f32 %v1264, %v1270
      %v1280 = vmul.f32 %v1265, %v1274
      %v1282 = vlaneseq
      %v1283 = vshrl.u32 %v1282, 7
      %v1284 = vsub.s32 0, %v1283
      %v1285 = vrot.slane %v818, %v1284
      %v1286 = vlaneseq
      %v1287 = vshrl.u32 %v1286, 7
      %v1288 = vsub.s32 1, %v1287
      %v1289 = vrot.slane %v818, %v1288
      %v1292 = vadd.f32 %v1277, %v1285
      %v1293 = vadd.f32 %v1278, %v1289
      %v1294 = vadd.f32 %v1279, %v1285
      %v1295 = vadd.f32 %v1280, %v1289
      %v1296 = vmax.f32 %v1292, 0.0
      %v1297 = vmax.f32 %v1293, 0.0
      %v1298 = vmax.f32 %v1294, 0.0
      %v1299 = vmax.f32 %v1295, 0.0
      %v1300 = vadd.f32 %v1296, %v1298
      %v1301 = vrot.slane %v1300, 4
      %v1302 = vadd.f32 %v1300, %v1301
      %v1303 = vrot.slane %v1302, 2
      %v1304 = vadd.f32 %v1302, %v1303
      %v1305 = vrot.slane %v1304, 1
      %v1306 = vadd.f32 %v1304, %v1305
      %v1307 = vadd.f32 %v1297, %v1299
      %v1308 = vrot.slane %v1307, 4
      %v1309 = vadd.f32 %v1307, %v1308
      %v1310 = vrot.slane %v1309, 2
      %v1311 = vadd.f32 %v1309, %v1310
      %v1312 = vrot.slane %v1311, 1
      %v1313 = vadd.f32 %v1311, %v1312
      %v1314 = vld [vmem:[%s7] sm:$0xff]
      %v1315 = vld [vmem:[%s7 + $0x8] sm:$0xff]
      %v1316 = vld [vmem:[%s7 + $0x10] sm:$0xff]
      %v1317 = vld [vmem:[%s7 + $0x18] sm:$0xff]
      %v1318 = vld [vmem:[%s7 + $0x20] sm:$0xff]
      %v1319 = vld [vmem:[%s7 + $0x28] sm:$0xff]
      %v1320 = vld [vmem:[%s7 + $0x30] sm:$0xff]
      %v1321 = vld [vmem:[%s7 + $0x38] sm:$0xff]
      %v1322 = vld [vmem:[%s7 + $0x40] sm:$0xff]
      %v1323 = vld [vmem:[%s7 + $0x48] sm:$0xff]
      %v1324 = vld [vmem:[%s7 + $0x50] sm:$0xff]
      %v1325 = vld [vmem:[%s7 + $0x58] sm:$0xff]
      %v1326 = vld [vmem:[%s7 + $0x60] sm:$0xff]
      %v1327 = vld [vmem:[%s7 + $0x68] sm:$0xff]
      %v1328 = vld [vmem:[%s7 + $0x70] sm:$0xff]
      %v1329 = vld [vmem:[%s7 + $0x78] sm:$0xff]
      %v1330 = vld [vmem:[%s7 + $0x80] sm:$0xff]
      %v1331 = vld [vmem:[%s7 + $0x88] sm:$0xff]
      %v1332 = vld [vmem:[%s7 + $0x90] sm:$0xff]
      %v1333 = vld [vmem:[%s7 + $0x98] sm:$0xff]
      %v1334 = vld [vmem:[%s7 + $0xa0] sm:$0xff]
      %v1335 = vld [vmem:[%s7 + $0xa8] sm:$0xff]
      %v1336 = vld [vmem:[%s7 + $0xb0] sm:$0xff]
      %v1337 = vld [vmem:[%s7 + $0xb8] sm:$0xff]
      %v1338 = vld [vmem:[%s7 + $0xc0] sm:$0xff]
      %v1339 = vld [vmem:[%s7 + $0xc8] sm:$0xff]
      %v1340 = vld [vmem:[%s7 + $0xd0] sm:$0xff]
      %v1341 = vld [vmem:[%s7 + $0xd8] sm:$0xff]
      %v1342 = vld [vmem:[%s7 + $0xe0] sm:$0xff]
      %v1343 = vld [vmem:[%s7 + $0xe8] sm:$0xff]
      %v1344 = vld [vmem:[%s7 + $0xf0] sm:$0xff]
      %v1345 = vld [vmem:[%s7 + $0xf8] sm:$0xff]
      %v1346 = vld [vmem:[%s8] sm:$0x1]
      %1347 = vmatprep.subr.mxu0 0.0
      %1348 = vmatpush1.msra.mxu0 %v1314
      %1349 = vmatprep.subr.mxu0 0.0
      %1350 = vmatpush1.msra.mxu0 %v1315
      %1351 = vmatprep.subr.mxu0 0.0
      %1352 = vmatpush1.msra.mxu0 %v1316
      %1353 = vmatprep.subr.mxu0 0.0
      %1354 = vmatpush1.msra.mxu0 %v1317
      %1355 = vmatprep.subr.mxu0 0.0
      %1356 = vmatpush1.msra.mxu0 %v1318
      %1357 = vmatprep.subr.mxu0 0.0
      %1358 = vmatpush1.msra.mxu0 %v1319
      %1359 = vmatprep.subr.mxu0 0.0
      %1360 = vmatpush1.msra.mxu0 %v1320
      %1361 = vmatprep.subr.mxu0 0.0
      %1362 = vmatpush1.msra.mxu0 %v1321
      %1363 = vmatprep.subr.mxu0 0.0
      %1364 = vmatpush1.msra.mxu0 %v1322
      %1365 = vmatprep.subr.mxu0 0.0
      %1366 = vmatpush1.msra.mxu0 %v1323
      %1367 = vmatprep.subr.mxu0 0.0
      %1368 = vmatpush1.msra.mxu0 %v1324
      %1369 = vmatprep.subr.mxu0 0.0
      %1370 = vmatpush1.msra.mxu0 %v1325
      %1371 = vmatprep.subr.mxu0 0.0
      %1372 = vmatpush1.msra.mxu0 %v1326
      %1373 = vmatprep.subr.mxu0 0.0
      %1374 = vmatpush1.msra.mxu0 %v1327
      %1375 = vmatprep.subr.mxu0 0.0
      %1376 = vmatpush1.msra.mxu0 %v1328
      %1377 = vmatprep.subr.mxu0 0.0
      %1378 = vmatpush1.msra.mxu0 %v1329
      %1379 = vmatprep.subr.mxu0 0.0
      %1380 = vmatpush1.msra.mxu0 %v1330
      %1381 = vmatprep.subr.mxu0 0.0
      %1382 = vmatpush1.msra.mxu0 %v1331
      %1383 = vmatprep.subr.mxu0 0.0
      %1384 = vmatpush1.msra.mxu0 %v1332
      %1385 = vmatprep.subr.mxu0 0.0
      %1386 = vmatpush1.msra.mxu0 %v1333
      %1387 = vmatprep.subr.mxu0 0.0
      %1388 = vmatpush1.msra.mxu0 %v1334
      %1389 = vmatprep.subr.mxu0 0.0
      %1390 = vmatpush1.msra.mxu0 %v1335
      %1391 = vmatprep.subr.mxu0 0.0
      %1392 = vmatpush1.msra.mxu0 %v1336
      %1393 = vmatprep.subr.mxu0 0.0
      %1394 = vmatpush1.msra.mxu0 %v1337
      %1395 = vmatprep.subr.mxu0 0.0
      %1396 = vmatpush1.msra.mxu0 %v1338
      %1397 = vmatprep.subr.mxu0 0.0
      %1398 = vmatpush1.msra.mxu0 %v1339
      %1399 = vmatprep.subr.mxu0 0.0
      %1400 = vmatpush1.msra.mxu0 %v1340
      %1401 = vmatprep.subr.mxu0 0.0
      %1402 = vmatpush1.msra.mxu0 %v1341
      %1403 = vmatprep.subr.mxu0 0.0
      %1404 = vmatpush1.msra.mxu0 %v1342
      %1405 = vmatprep.subr.mxu0 0.0
      %1406 = vmatpush1.msra.mxu0 %v1343
      %1407 = vmatprep.subr.mxu0 0.0
      %1408 = vmatpush1.msra.mxu0 %v1344
      %1409 = vmatprep.subr.mxu0 0.0
      %1410 = vmatpush1.msra.mxu0 %v1345
      %1411 = vmatprep.mubr.f32.mxu0 %v1313
      %1412 = vmatmul.mubr.f32.gmra.mrb[0].mxu0 %v1306
      %v1413 = vpop.f32.mrb[0].mxu0
      %v1414 = vadd.f32 %v1346, %v1413
      %v1415 = vpop.f32.mrb[0].mxu0
      %1416 = vdwg.mxu0
      %v1417 = vmax.f32 %v1414, 0.0
      %v1418 = vld [vmem:[%s9] sm:$0xff]
      %v1419 = vld [vmem:[%s10] sm:$0x3]
      %v1421 = vcombine.high %v1418, %v1418
      %v1423 = vlaneseq
      %v1424 = vshrl.u32 %v1423, 7
      %v1425 = vsub.s32 0, %v1424
      %v1426 = vrot.slane %v1419, %v1425
      %v1427 = vlaneseq
      %v1428 = vshrl.u32 %v1427, 7
      %v1429 = vsub.s32 1, %v1428
      %v1430 = vrot.slane %v1419, %v1429
      %vm1433 = vcmask 31744
      %v1435 = vsel %vm1433, %v1417, 0
      %vm1437 = vcmask 1043456
      %v1438 = vsel %vm1437, %v1418, 0
      %v1440 = vsel %vm1437, %v1421, 0
      %1442 = vmatprep.subr.mxu0 %v1440
      %1443 = vmatpush1.msra.mxu0 %v1438
      %1444 = vmatprep.subr.mxu0 0.0
      %1445 = vmatpush1.msra.mxu0 0.0
      %1446 = vmatprep.subr.mxu0 0.0
      %1447 = vmatpush1.msra.mxu0 0.0
      %1448 = vmatprep.subr.mxu0 0.0
      %1449 = vmatpush1.msra.mxu0 0.0
      %1450 = vmatprep.subr.mxu0 0.0
      %1451 = vmatpush1.msra.mxu0 0.0
      %1452 = vmatprep.subr.mxu0 0.0
      %1453 = vmatpush1.msra.mxu0 0.0
      %1454 = vmatprep.subr.mxu0 0.0
      %1455 = vmatpush1.msra.mxu0 0.0
      %1456 = vmatprep.subr.mxu0 0.0
      %1457 = vmatpush1.msra.mxu0 0.0
      %1458 = vmatprep.subr.mxu0 0.0
      %1459 = vmatpush1.msra.mxu0 0.0
      %1460 = vmatprep.subr.mxu0 0.0
      %1461 = vmatpush1.msra.mxu0 0.0
      %1462 = vmatprep.subr.mxu0 0.0
      %1463 = vmatpush1.msra.mxu0 0.0
      %1464 = vmatprep.subr.mxu0 0.0
      %1465 = vmatpush1.msra.mxu0 0.0
      %1466 = vmatprep.subr.mxu0 0.0
      %1467 = vmatpush1.msra.mxu0 0.0
      %1468 = vmatprep.subr.mxu0 0.0
      %1469 = vmatpush1.msra.mxu0 0.0
      %1470 = vmatprep.subr.mxu0 0.0
      %1471 = vmatpush1.msra.mxu0 0.0
      %1472 = vmatprep.subr.mxu0 0.0
      %1473 = vmatpush1.msra.mxu0 0.0
      %1474 = vmatprep.subr.mxu0 0.0
      %1475 = vmatpush1.msra.mxu0 0.0
      %1476 = vmatprep.subr.mxu0 0.0
      %1477 = vmatpush1.msra.mxu0 0.0
      %1478 = vmatprep.subr.mxu0 0.0
      %1479 = vmatpush1.msra.mxu0 0.0
      %1480 = vmatprep.subr.mxu0 0.0
      %1481 = vmatpush1.msra.mxu0 0.0
      %1482 = vmatprep.subr.mxu0 0.0
      %1483 = vmatpush1.msra.mxu0 0.0
      %1484 = vmatprep.subr.mxu0 0.0
      %1485 = vmatpush1.msra.mxu0 0.0
      %1486 = vmatprep.subr.mxu0 0.0
      %1487 = vmatpush1.msra.mxu0 0.0
      %1488 = vmatprep.subr.mxu0 0.0
      %1489 = vmatpush1.msra.mxu0 0.0
      %1490 = vmatprep.subr.mxu0 0.0
      %1491 = vmatpush1.msra.mxu0 0.0
      %1492 = vmatprep.subr.mxu0 0.0
      %1493 = vmatpush1.msra.mxu0 0.0
      %1494 = vmatprep.subr.mxu0 0.0
      %1495 = vmatpush1.msra.mxu0 0.0
      %1496 = vmatprep.subr.mxu0 0.0
      %1497 = vmatpush1.msra.mxu0 0.0
      %1498 = vmatprep.subr.mxu0 0.0
      %1499 = vmatpush1.msra.mxu0 0.0
      %1500 = vmatprep.subr.mxu0 0.0
      %1501 = vmatpush1.msra.mxu0 0.0
      %1502 = vmatprep.subr.mxu0 0.0
      %1503 = vmatpush1.msra.mxu0 0.0
      %1504 = vmatprep.subr.mxu0 0.0
      %1505 = vmatpush1.msra.mxu0 0.0
      %1506 = vmatprep.mubr.f32.mxu0 0.0
      %1507 = vmatmul.mubr.f32.gmra.mrb[0].mxu0 %v1435
      %v1508 = vpop.f32.mrb[0].mxu0
      %v1509 = vadd.f32 %v1426, %v1508
      %v1510 = vpop.f32.mrb[0].mxu0
      %v1511 = vadd.f32 %v1430, %v1510
      %1512 = vdwg.mxu0
      %v1513 = vsub.f32 0.0, %v1509
      %v1514 = vsub.f32 0.0, %v1511
      %v1515 = vmul.f32 %v1513, 1.442695
      %v1516 = vpow.pop %v1515
      %v1517 = vmul.f32 %v1514, 1.442695
      %v1518 = vpow.pop %v1517
      %v1519 = vadd.f32 %v1516, 1.0
      %v1520 = vadd.f32 %v1518, 1.0
      %v1521 = vrcp.pop %v1519
      %v1522 = vmul.f32 1.0, %v1521
      %v1523 = vrcp.pop %v1520
      %v1524 = vmul.f32 1.0, %v1523
      %v1525 = vlaneseq
      %v1526 = vshrl.u32 %v1525, 7
      %v1527 = vsub.s32 0, %v1526
      %v1528 = vrot.slane %v1522, %v1527
      %v1529 = vlaneseq
      %v1530 = vshrl.u32 %v1529, 7
      %v1531 = vsub.s32 0, %v1530
      %v1532 = vrot.slane %v1524, %v1531
      %v1533 = vmul.f32 %v1296, %v1528
      %v1534 = vmul.f32 %v1297, %v1532
      %v1535 = vmul.f32 %v1298, %v1528
      %v1536 = vmul.f32 %v1299, %v1532
      %v1537 = vpack.c.bf16 %v447, %v446
      %v1538 = vld [vmem:[%s11] sm:$0xff]
      %v1539 = vld [vmem:[%s11 + $0x8] sm:$0xff]
      %v1540 = vld [vmem:[%s11 + $0x10] sm:$0xff]
      %v1541 = vld [vmem:[%s11 + $0x18] sm:$0xff]
      %v1542 = vld [vmem:[%s11 + $0x20] sm:$0xff]
      %v1543 = vld [vmem:[%s11 + $0x28] sm:$0xff]
      %v1544 = vld [vmem:[%s11 + $0x30] sm:$0xff]
      %v1545 = vld [vmem:[%s11 + $0x38] sm:$0xff]
      %v1546 = vld [vmem:[%s11 + $0x40] sm:$0xff]
      %v1547 = vld [vmem:[%s11 + $0x48] sm:$0xff]
      %v1548 = vld [vmem:[%s11 + $0x50] sm:$0xff]
      %v1549 = vld [vmem:[%s11 + $0x58] sm:$0xff]
      %v1550 = vld [vmem:[%s11 + $0x60] sm:$0xff]
      %v1551 = vld [vmem:[%s11 + $0x68] sm:$0xff]
      %v1552 = vld [vmem:[%s11 + $0x70] sm:$0xff]
      %v1553 = vld [vmem:[%s11 + $0x78] sm:$0xff]
      %v1554 = vld [vmem:[%s12] sm:$0x3]
      %v1556 = vlaneseq
      %v1557 = vshrl.u32 %v1556, 7
      %v1558 = vsub.s32 0, %v1557
      %v1559 = vrot.slane %v1554, %v1558
      %v1560 = vlaneseq
      %v1561 = vshrl.u32 %v1560, 7
      %v1562 = vsub.s32 1, %v1561
      %v1563 = vrot.slane %v1554, %v1562
      %v1582 = vunpack.c.l.b16 %v1538
      %v1583 = vunpack.c.h.b16 %v1538
      %v1584 = vunpack.c.l.b16 %v1539
      %v1585 = vunpack.c.h.b16 %v1539
      %v1586 = vunpack.c.l.b16 %v1540
      %v1587 = vunpack.c.h.b16 %v1540
      %v1588 = vunpack.c.l.b16 %v1541
      %v1589 = vunpack.c.h.b16 %v1541
      %v1590 = vunpack.c.l.b16 %v1542
      %v1591 = vunpack.c.h.b16 %v1542
      %v1592 = vunpack.c.l.b16 %v1543
      %v1593 = vunpack.c.h.b16 %v1543
      %v1594 = vunpack.c.l.b16 %v1544
      %v1595 = vunpack.c.h.b16 %v1544
      %v1596 = vunpack.c.l.b16 %v1545
      %v1597 = vunpack.c.h.b16 %v1545
      %v1598 = vunpack.c.l.b16 %v1546
      %v1599 = vunpack.c.h.b16 %v1546
      %v1600 = vunpack.c.l.b16 %v1547
      %v1601 = vunpack.c.h.b16 %v1547
      %v1602 = vunpack.c.l.b16 %v1548
      %v1603 = vunpack.c.h.b16 %v1548
      %v1604 = vunpack.c.l.b16 %v1549
      %v1605 = vunpack.c.h.b16 %v1549
      %v1606 = vunpack.c.l.b16 %v1550
      %v1607 = vunpack.c.h.b16 %v1550
      %v1608 = vunpack.c.l.b16 %v1551
      %v1609 = vunpack.c.h.b16 %v1551
      %v1610 = vunpack.c.l.b16 %v1552
      %v1611 = vunpack.c.h.b16 %v1552
      %v1612 = vunpack.c.l.b16 %v1553
      %v1613 = vunpack.c.h.b16 %v1553
      %v1614 = vpack.c.b16 %v1584, %v1582
      %v1615 = vpack.c.b16 %v1585, %v1583
      %v1616 = vpack.c.b16 %v1588, %v1586
      %v1617 = vpack.c.b16 %v1589, %v1587
      %v1618 = vpack.c.b16 %v1592, %v1590
      %v1619 = vpack.c.b16 %v1593, %v1591
      %v1620 = vpack.c.b16 %v1596, %v1594
      %v1621 = vpack.c.b16 %v1597, %v1595
      %v1622 = vpack.c.b16 %v1600, %v1598
      %v1623 = vpack.c.b16 %v1601, %v1599
      %v1624 = vpack.c.b16 %v1604, %v1602
      %v1625 = vpack.c.b16 %v1605, %v1603
      %v1626 = vpack.c.b16 %v1608, %v1606
      %v1627 = vpack.c.b16 %v1609, %v1607
      %v1628 = vpack.c.b16 %v1612, %v1610
      %v1629 = vpack.c.b16 %v1613, %v1611
      %1646 = vmatprep.subr.bf16.mxu0 %v1615
      %1647 = vmatpush1.bf16.msra.mxu0 %v1614
      %1648 = vmatprep.subr.bf16.mxu0 %v1617
      %1649 = vmatpush1.bf16.msra.mxu0 %v1616
      %1650 = vmatprep.subr.bf16.mxu0 %v1619
      %1651 = vmatpush1.bf16.msra.mxu0 %v1618
      %1652 = vmatprep.subr.bf16.mxu0 %v1621
      %1653 = vmatpush1.bf16.msra.mxu0 %v1620
      %1654 = vmatprep.subr.bf16.mxu0 %v1623
      %1655 = vmatpush1.bf16.msra.mxu0 %v1622
      %1656 = vmatprep.subr.bf16.mxu0 %v1625
      %1657 = vmatpush1.bf16.msra.mxu0 %v1624
      %1658 = vmatprep.subr.bf16.mxu0 %v1627
      %1659 = vmatpush1.bf16.msra.mxu0 %v1626
      %1660 = vmatprep.subr.bf16.mxu0 %v1629
      %1661 = vmatpush1.bf16.msra.mxu0 %v1628
      %1662 = vmatprep.subr.bf16.mxu0 0
      %1663 = vmatpush1.bf16.msra.mxu0 0
      %1664 = vmatprep.subr.bf16.mxu0 0
      %1665 = vmatpush1.bf16.msra.mxu0 0
      %1666 = vmatprep.subr.bf16.mxu0 0
      %1667 = vmatpush1.bf16.msra.mxu0 0
      %1668 = vmatprep.subr.bf16.mxu0 0
      %1669 = vmatpush1.bf16.msra.mxu0 0
      %1670 = vmatprep.subr.bf16.mxu0 0
      %1671 = vmatpush1.bf16.msra.mxu0 0
      %1672 = vmatprep.subr.bf16.mxu0 0
      %1673 = vmatpush1.bf16.msra.mxu0 0
      %1674 = vmatprep.subr.bf16.mxu0 0
      %1675 = vmatpush1.bf16.msra.mxu0 0
      %1676 = vmatprep.subr.bf16.mxu0 0
      %1677 = vmatpush1.bf16.msra.mxu0 0
      %1678 = vmatprep.mubr.bf16.mxu0 0
      %1679 = vmatmul.mubr.bf16.gmra.mrb[0].mxu0 %v1537
      %v1680 = vpop.f32.mrb[0].mxu0
      %v1681 = vadd.f32 %v1559, %v1680
      %v1682 = vpop.f32.mrb[0].mxu0
      %v1683 = vadd.f32 %v1563, %v1682
      %v1684 = vpop.f32.mrb[0].mxu0
      %v1685 = vadd.f32 %v1559, %v1684
      %v1686 = vpop.f32.mrb[0].mxu0
      %v1687 = vadd.f32 %v1563, %v1686
      %1688 = vdwg.mxu0
      %v1689 = vadd.f32 %v1533, %v1681
      %v1690 = vadd.f32 %v1534, %v1683
      %v1691 = vadd.f32 %v1535, %v1685
      %v1692 = vadd.f32 %v1536, %v1687
      %1693 = vst [vmem:[%s440] sm:$0xff] %v1689
      %1694 = vst [vmem:[%s440 + $0x8] sm:$0xff] %v1690
      %1695 = vst [vmem:[%s440 + $0x10] sm:$0xff] %v1691
      %1696 = vst [vmem:[%s440 + $0x18] sm:$0xff] %v1692
      %p1697 = scmp.lt.s32.totalorder %s24, 1
      %s1698 = scalar_select %p1697, %s24, 1
      %s1699 = smul.addr %s1698, 4
      %s1700 = smul.addr %s1699, 8
      %s1701 = scalar_lea.vmem %s13, %s1700
      // Predicated region
      $region73: #{basic_block_forward.1} parent=71 // pred_check
        %p1702 = pneg %p320
      $region74: #{basic_block_forward.1} parent=71 // pred_check_branch
        %1704 = sbr.rel (%p1702) target = $region76
      $region75: #{basic_block_forward.1} parent=71 // pred_region
        _
      $region76: #{basic_block_forward.1} parent=71 // pred_fallthru
        _
    $region72: #{basic_block_forward.1} parent=5 // pred_fallthru
      _
    %p1705 = scmp.le.s32.totalorder 2, %s19
    // Predicated region
    $region77: #{basic_block_forward.1} parent=5 // pred_check
      %p1706 = pneg %p1705
    $region78: #{basic_block_forward.1} parent=5 // pred_check_branch
      %1708 = sbr.rel (%p1706) target = $region80
    $region79: #{basic_block_forward.1} parent=5 // pred_region
      %s1709 = ssub.s32 %s19, 2
      // Predicated region
      $region81: #{basic_block_forward.1} parent=79 // pred_check
        %p1710 = pneg %p326
      $region82: #{basic_block_forward.1} parent=79 // pred_check_branch
        %1712 = sbr.rel (%p1710) target = $region84
      $region83: #{basic_block_forward.1} parent=79 // pred_region
        %p1713 = scmp.lt.s32.totalorder %s25, 1
        %s1714 = scalar_select %p1713, %s25, 1
        %s1715 = smul.addr %s1714, 4
        %s1716 = smul.addr %s1715, 8
        %s1717 = scalar_lea.vmem %s13, %s1716
      $region84: #{basic_block_forward.1} parent=79 // pred_fallthru
        _
    $region80: #{basic_block_forward.1} parent=5 // pred_fallthru
      _
  $region6: #{basic_block_forward.1} parent=0 // loop_footer
    %s23 = sadd.s32 1, %s19
  $region7: #{basic_block_forward.1} parent=0 // loop_footer_branch
    %18 = sbr.rel target = $region3
  $region8: #{basic_block_forward.1} parent=0 // loop_exit
    _

</llo_original>
